<compile_context>
chip_gen: v6e
topology: v6e:2x2x1
jax: 0.10.0
libtpu: 0.0.40
codegen_flags: <defaults>
</compile_context>

<pallas_src>
import jax
import jax.numpy as jnp
from jax.experimental import pallas as pl
from jax.experimental.pallas import tpu as pltpu

C = 4          # channel count implied by the `for i in range(4)` restore loop
LANE = 128     # TPU lane width
CHUNK = 8      # sublane rows per inner compute chunk (one f32 vreg per temp)
RT_MAX = 1024  # max pixel rows (x128 lanes) per grid block (~10 MiB dbl-buffered)
EPS = 1e-23


def _loss_partials_kernel(w1_ref, b1_ref, w2_ref, b2_ref,
                          x_ref, p_ref, m_ref, l_ref, out_ref):
    """Per-batch partial L1 *sums*, kept as (8,128) vector accumulators.

    x_ref, m_ref : (1, C, rt, 128) VMEM block (one batch sample, rt pixel rows)
    p_ref, l_ref : (1, rt, 128)    VMEM block
    w1/w2        : (C, C) SMEM, b1/b2 : (C,) SMEM  (surrogate rnet 1x1 convs,
                   pre-scaled by 0.5 so sigmoid(z) == 0.5*tanh(a) + 0.5)
    out_ref      : (1, 4, 8, 128) VMEM block, resident across the row axis:
                   [|p_lr-L|, |p_hr-P|, |clip(rest_lr)-M|, |clip(rest_hr)-X|]
    """
    ri = pl.program_id(1)

    # Hoist all SMEM scalar reads out of the chunk loop (loop invariant).
    w1 = [[w1_ref[o, c] for c in range(C)] for o in range(C)]
    w2 = [[w2_ref[o, c] for c in range(C)] for o in range(C)]
    bias1 = [b1_ref[o] for o in range(C)]
    bias2 = [b2_ref[o] for o in range(C)]

    rt = x_ref.shape[2]
    n_chunks = rt // CHUNK        # static; rt is always a multiple of CHUNK

    def chunk_body(ci, carry):
        a_cl, a_ch, a_rl, a_rh = carry
        row = pl.multiple_of(ci * CHUNK, CHUNK)
        rows = pl.ds(row, CHUNK)

        Xc = [x_ref[0, c, rows, :].astype(jnp.float32) for c in range(C)]
        Mc = [m_ref[0, c, rows, :].astype(jnp.float32) for c in range(C)]
        Pv = p_ref[0, rows, :].astype(jnp.float32)
        Lv = l_ref[0, rows, :].astype(jnp.float32)

        # Surrogate rnet: two 1x1-conv + sigmoid heads -> w_local, w_ext.
        # The 4x4 channel mix stays on the VPU (far too small for the MXU).
        w_local, w_ext, cube_lr, cube_hr = [], [], [], []
        for o in range(C):
            a1 = w1[o][0] * Xc[0] + bias1[o]
            a2 = w2[o][0] * Xc[0] + bias2[o]
            for c in range(1, C):
                a1 = a1 + w1[o][c] * Xc[c]
                a2 = a2 + w2[o][c] * Xc[c]
            # weights/bias were pre-scaled by 0.5 in the wrapper, so
            # sigmoid(Wx+b) == 0.5*tanh(a) + 0.5  (one EUP op, no extra vmul)
            wl = 0.5 * jnp.tanh(a1) + 0.5
            we = 0.5 * jnp.tanh(a2) + 0.5
            w_local.append(wl)
            w_ext.append(we)
            cube_lr.append(wl * Mc[o])   # cached for the restore loop
            cube_hr.append(we * Xc[o])

        p_lr = cube_lr[0]
        p_hr = cube_hr[0]
        for c in range(1, C):
            p_lr = p_lr + cube_lr[c]
            p_hr = p_hr + cube_hr[c]

        a_cl = a_cl + jnp.abs(p_lr - Lv)
        a_ch = a_ch + jnp.abs(p_hr - Pv)

        # Restore reconstruction: "sum of the other 3 channels" = p - cube_i.
        # Exact division matches torch.div semantics (no approx-recip inf/NaN).
        for i in range(C):
            r_lr = (Lv - (p_lr - cube_lr[i])) / (w_local[i] + EPS)
            r_hr = (Pv - (p_hr - cube_hr[i])) / (w_ext[i] + EPS)
            a_rl = a_rl + jnp.abs(jnp.clip(r_lr, 0.0, 1.0) - Mc[i])
            a_rh = a_rh + jnp.abs(jnp.clip(r_hr, 0.0, 1.0) - Xc[i])
        return a_cl, a_ch, a_rl, a_rh

    zeros = jnp.zeros((CHUNK, LANE), jnp.float32)
    # TODO(synk): unroll=2 could pack the VALU slots tighter but ~doubles the
    #             live vreg set (spill risk); left rolled pending a bundle check.
    a_cl, a_ch, a_rl, a_rh = jax.lax.fori_loop(
        0, n_chunks, chunk_body, (zeros, zeros, zeros, zeros))

    # Per-batch resident accumulator: init at the first row-tile, then add.
    @pl.when(ri == 0)
    def _():
        out_ref[...] = jnp.zeros_like(out_ref)

    out_ref[0, 0] = out_ref[0, 0] + a_cl
    out_ref[0, 1] = out_ref[0, 1] + a_ch
    out_ref[0, 2] = out_ref[0, 2] + a_rl
    out_ref[0, 3] = out_ref[0, 3] + a_rh


def _round_up(a, b):
    return -(-a // b) * b


def _row_tile(rows):
    """Largest multiple-of-CHUNK divisor of `rows` that is <= RT_MAX."""
    cap = min(RT_MAX, rows)
    cap -= cap % CHUNK
    for cand in range(cap, CHUNK - 1, -CHUNK):
        if rows % cand == 0:
            return cand
    return CHUNK


def trainer_loss(X, P, M, L, W1, b1, W2, b2):
    """X,M: (B,C,H,W) ; P,L: (B,1,H,W).  Returns the scalar loss of loss_fn."""
    B, Cx, H, W = X.shape
    assert Cx == C
    N = H * W

    # ---- layout glue: reshape only; a pad copy happens ONLY when H*W is not
    #      a multiple of 128*8 (all common image sizes reshape for free) ----
    R = _round_up(_round_up(N, LANE) // LANE, CHUNK)     # pixel rows of width 128
    rt = _row_tile(R)
    if rt < 64 < R:            # awkward row count -> tiny extra pad buys big tiles
        R = _round_up(R, 64)
        rt = _row_tile(R)
    Rt = R // rt
    N_pad = R * LANE

    x = X.reshape(B, C, N)     # native dtype kept; cast per-chunk in-kernel
    m = M.reshape(B, C, N)
    p = P.reshape(B, N)
    l = L.reshape(B, N)
    if N_pad != N:
        pad = N_pad - N
        # zero padding contributes exactly 0 to every L1 sum (M=X=P=L=0 there)
        x = jnp.pad(x, ((0, 0), (0, 0), (0, pad)))
        m = jnp.pad(m, ((0, 0), (0, 0), (0, pad)))
        p = jnp.pad(p, ((0, 0), (0, pad)))
        l = jnp.pad(l, ((0, 0), (0, pad)))
    x = x.reshape(B, C, R, LANE)
    m = m.reshape(B, C, R, LANE)
    p = p.reshape(B, R, LANE)
    l = l.reshape(B, R, LANE)

    # Fold the sigmoid(z) = 0.5*tanh(0.5*z) + 0.5 pre-scale into the tiny params.
    W1h = (0.5 * W1).astype(jnp.float32)
    b1h = (0.5 * b1).astype(jnp.float32)
    W2h = (0.5 * W2).astype(jnp.float32)
    b2h = (0.5 * b2).astype(jnp.float32)

    smem = pl.BlockSpec(memory_space=pltpu.MemorySpace.SMEM)
    in_bytes = (2 * C + 2) * x.dtype.itemsize * B * N_pad

    partials = pl.pallas_call(
        _loss_partials_kernel,
        out_shape=jax.ShapeDtypeStruct((B, 4, CHUNK, LANE), jnp.float32),
        grid=(B, Rt),
        in_specs=[
            smem, smem, smem, smem,                                         # params
            pl.BlockSpec((1, C, rt, LANE), lambda bb, rr: (bb, 0, rr, 0)),  # X
            pl.BlockSpec((1, rt, LANE),    lambda bb, rr: (bb, rr, 0)),     # P
            pl.BlockSpec((1, C, rt, LANE), lambda bb, rr: (bb, 0, rr, 0)),  # M
            pl.BlockSpec((1, rt, LANE),    lambda bb, rr: (bb, rr, 0)),     # L
        ],
        out_specs=pl.BlockSpec((1, 4, CHUNK, LANE), lambda bb, rr: (bb, 0, 0, 0)),
        compiler_params=pltpu.CompilerParams(
            dimension_semantics=("parallel", "arbitrary"),
            vmem_limit_bytes=32 * 1024 * 1024),
        cost_estimate=pl.CostEstimate(
            flops=int(190 * B * N_pad),
            transcendentals=int(16 * B * N_pad),
            bytes_accessed=int(in_bytes + B * 4 * CHUNK * LANE * 4)),
    )(W1h, b1h, W2h, b2h, x, p, m, l)

    # Single tiny cross-lane/sublane reduce, done once outside the kernel.
    sums = jnp.sum(partials, axis=(0, 2, 3))   # (4,)

    # ---- final means / loss composition (original element counts) --------
    n_content = B * 1 * H * W
    n_restore = B * C * H * W

    loss_content = 0.5 * (sums[1] / n_content) + 0.5 * (sums[0] / n_content)
    loss_restore = 0.5 * (sums[3] / n_restore) + 0.5 * (sums[2] / n_restore)

    bad = jnp.isinf(loss_restore) | jnp.isnan(loss_restore)
    loss = jnp.where(bad, loss_content,
                     0.5 * loss_content + 0.5 * loss_restore * 2.0)
    return loss


def trainer_loss_ref(X, P, M, L, W1, b1, W2, b2):
    """Pure-JAX reference mirroring the PyTorch loss_fn (for validation)."""
    Xf = X.astype(jnp.float32)
    Mf = M.astype(jnp.float32)
    Pf = P.astype(jnp.float32)
    Lf = L.astype(jnp.float32)
    pre1 = jnp.einsum('oc,bchw->bohw', W1, Xf) + b1[None, :, None, None]
    pre2 = jnp.einsum('oc,bchw->bohw', W2, Xf) + b2[None, :, None, None]
    w_local = jax.nn.sigmoid(pre1)
    w_ext = jax.nn.sigmoid(pre2)
    cube_lr = w_local * Mf
    cube_hr = w_ext * Xf
    p_lr = jnp.sum(cube_lr, axis=1, keepdims=True)
    p_hr = jnp.sum(cube_hr, axis=1, keepdims=True)
    loss_content = 0.5 * jnp.mean(jnp.abs(p_hr - Pf)) + 0.5 * jnp.mean(jnp.abs(p_lr - Lf))
    rest_lr = []
    rest_hr = []
    for i in range(4):
        others = [j for j in range(4) if j != i]
        r_lr = (Lf[:, 0] - jnp.sum(cube_lr[:, others], axis=1)) / (w_local[:, i] + EPS)
        r_hr = (Pf[:, 0] - jnp.sum(cube_hr[:, others], axis=1)) / (w_ext[:, i] + EPS)
        rest_lr.append(r_lr)
        rest_hr.append(r_hr)
    restore_lr = jnp.clip(jnp.stack(rest_lr, axis=1), 0.0, 1.0)
    restore_hr = jnp.clip(jnp.stack(rest_hr, axis=1), 0.0, 1.0)
    loss_restore = 0.5 * jnp.mean(jnp.abs(restore_hr - Xf)) + \
                   0.5 * jnp.mean(jnp.abs(restore_lr - Mf))
    bad = jnp.isinf(loss_restore) | jnp.isnan(loss_restore)
    return jnp.where(bad, loss_content,
                     0.5 * loss_content + 0.5 * loss_restore * 2.0)


if __name__ == "__main__":
    key = jax.random.PRNGKey(0)
    kx, kp, km, kl, kw1, kb1, kw2, kb2 = jax.random.split(key, 8)

    B, H, W = 2, 16, 16
    # normalized images in [0, 1] (per the module's img2tf comment)
    X = jax.random.uniform(kx, (B, C, H, W), dtype=jnp.float32)
    M = jax.random.uniform(km, (B, C, H, W), dtype=jnp.float32)
    P = jax.random.uniform(kp, (B, 1, H, W), dtype=jnp.float32)
    L = jax.random.uniform(kl, (B, 1, H, W), dtype=jnp.float32)

    # deterministic surrogate-rnet parameters (1x1 conv heads)
    W1 = 0.3 * jax.random.normal(kw1, (C, C), dtype=jnp.float32)
    b1 = 0.1 * jax.random.normal(kb1, (C,), dtype=jnp.float32)
    W2 = 0.3 * jax.random.normal(kw2, (C, C), dtype=jnp.float32)
    b2 = 0.1 * jax.random.normal(kb2, (C,), dtype=jnp.float32)

    loss = trainer_loss(X, P, M, L, W1, b1, W2, b2)
    loss = jax.block_until_ready(loss)

    ref = trainer_loss_ref(X, P, M, L, W1, b1, W2, b2)
    assert jnp.isfinite(loss), "kernel produced non-finite loss"
    # tolerance covers the tanh-based sigmoid rewrite and accumulation order
    assert jnp.allclose(loss, ref, rtol=2e-3, atol=2e-4), (loss, ref)

    print("KERNEL_OK")
</pallas_src>

<mosaic_0001>
module attributes {stable_mosaic.version = 11 : i64} {
  func.func @_loss_partials_kernel(%arg0: i32, %arg1: i32, %arg2: memref<4x4xf32, #tpu.memory_space<smem>>, %arg3: memref<4xf32, #tpu.memory_space<smem>>, %arg4: memref<4x4xf32, #tpu.memory_space<smem>>, %arg5: memref<4xf32, #tpu.memory_space<smem>>, %arg6: memref<1x4x8x128xf32, #tpu.memory_space<vmem>>, %arg7: memref<1x8x128xf32, #tpu.memory_space<vmem>>, %arg8: memref<1x4x8x128xf32, #tpu.memory_space<vmem>>, %arg9: memref<1x8x128xf32, #tpu.memory_space<vmem>>, %arg10: memref<1x4x8x128xf32, #tpu.memory_space<vmem>>) attributes {dimension_semantics = [#tpu.dimension_semantics<parallel>, #tpu.dimension_semantics<arbitrary>], iteration_bounds = array<i64: 2, 1>, scalar_prefetch = 0 : i64, scratch_operands = 0 : i64, tpu.core_type = #tpu.core_type<tc>, window_params = [{transform_indices = @transform_0, window_bounds = array<i64: 4, 4>}, {transform_indices = @transform_1, window_bounds = array<i64: 4>}, {transform_indices = @transform_2, window_bounds = array<i64: 4, 4>}, {transform_indices = @transform_3, window_bounds = array<i64: 4>}, {transform_indices = @transform_4, window_bounds = array<i64: 1, 4, 8, 128>}, {transform_indices = @transform_5, window_bounds = array<i64: 1, 8, 128>}, {transform_indices = @transform_6, window_bounds = array<i64: 1, 4, 8, 128>}, {transform_indices = @transform_7, window_bounds = array<i64: 1, 8, 128>}, {transform_indices = @transform_8, window_bounds = array<i64: 1, 4, 8, 128>}]} {
    %c0 = arith.constant 0 : index
    %c0_0 = arith.constant 0 : index
    %0 = memref.load %arg2[%c0, %c0_0] : memref<4x4xf32, #tpu.memory_space<smem>>
    %c0_1 = arith.constant 0 : index
    %c1 = arith.constant 1 : index
    %1 = memref.load %arg2[%c0_1, %c1] : memref<4x4xf32, #tpu.memory_space<smem>>
    %c0_2 = arith.constant 0 : index
    %c2 = arith.constant 2 : index
    %2 = memref.load %arg2[%c0_2, %c2] : memref<4x4xf32, #tpu.memory_space<smem>>
    %c0_3 = arith.constant 0 : index
    %c3 = arith.constant 3 : index
    %3 = memref.load %arg2[%c0_3, %c3] : memref<4x4xf32, #tpu.memory_space<smem>>
    %c1_4 = arith.constant 1 : index
    %c0_5 = arith.constant 0 : index
    %4 = memref.load %arg2[%c1_4, %c0_5] : memref<4x4xf32, #tpu.memory_space<smem>>
    %c1_6 = arith.constant 1 : index
    %c1_7 = arith.constant 1 : index
    %5 = memref.load %arg2[%c1_6, %c1_7] : memref<4x4xf32, #tpu.memory_space<smem>>
    %c1_8 = arith.constant 1 : index
    %c2_9 = arith.constant 2 : index
    %6 = memref.load %arg2[%c1_8, %c2_9] : memref<4x4xf32, #tpu.memory_space<smem>>
    %c1_10 = arith.constant 1 : index
    %c3_11 = arith.constant 3 : index
    %7 = memref.load %arg2[%c1_10, %c3_11] : memref<4x4xf32, #tpu.memory_space<smem>>
    %c2_12 = arith.constant 2 : index
    %c0_13 = arith.constant 0 : index
    %8 = memref.load %arg2[%c2_12, %c0_13] : memref<4x4xf32, #tpu.memory_space<smem>>
    %c2_14 = arith.constant 2 : index
    %c1_15 = arith.constant 1 : index
    %9 = memref.load %arg2[%c2_14, %c1_15] : memref<4x4xf32, #tpu.memory_space<smem>>
    %c2_16 = arith.constant 2 : index
    %c2_17 = arith.constant 2 : index
    %10 = memref.load %arg2[%c2_16, %c2_17] : memref<4x4xf32, #tpu.memory_space<smem>>
    %c2_18 = arith.constant 2 : index
    %c3_19 = arith.constant 3 : index
    %11 = memref.load %arg2[%c2_18, %c3_19] : memref<4x4xf32, #tpu.memory_space<smem>>
    %c3_20 = arith.constant 3 : index
    %c0_21 = arith.constant 0 : index
    %12 = memref.load %arg2[%c3_20, %c0_21] : memref<4x4xf32, #tpu.memory_space<smem>>
    %c3_22 = arith.constant 3 : index
    %c1_23 = arith.constant 1 : index
    %13 = memref.load %arg2[%c3_22, %c1_23] : memref<4x4xf32, #tpu.memory_space<smem>>
    %c3_24 = arith.constant 3 : index
    %c2_25 = arith.constant 2 : index
    %14 = memref.load %arg2[%c3_24, %c2_25] : memref<4x4xf32, #tpu.memory_space<smem>>
    %c3_26 = arith.constant 3 : index
    %c3_27 = arith.constant 3 : index
    %15 = memref.load %arg2[%c3_26, %c3_27] : memref<4x4xf32, #tpu.memory_space<smem>>
    %c0_28 = arith.constant 0 : index
    %c0_29 = arith.constant 0 : index
    %16 = memref.load %arg4[%c0_28, %c0_29] : memref<4x4xf32, #tpu.memory_space<smem>>
    %c0_30 = arith.constant 0 : index
    %c1_31 = arith.constant 1 : index
    %17 = memref.load %arg4[%c0_30, %c1_31] : memref<4x4xf32, #tpu.memory_space<smem>>
    %c0_32 = arith.constant 0 : index
    %c2_33 = arith.constant 2 : index
    %18 = memref.load %arg4[%c0_32, %c2_33] : memref<4x4xf32, #tpu.memory_space<smem>>
    %c0_34 = arith.constant 0 : index
    %c3_35 = arith.constant 3 : index
    %19 = memref.load %arg4[%c0_34, %c3_35] : memref<4x4xf32, #tpu.memory_space<smem>>
    %c1_36 = arith.constant 1 : index
    %c0_37 = arith.constant 0 : index
    %20 = memref.load %arg4[%c1_36, %c0_37] : memref<4x4xf32, #tpu.memory_space<smem>>
    %c1_38 = arith.constant 1 : index
    %c1_39 = arith.constant 1 : index
    %21 = memref.load %arg4[%c1_38, %c1_39] : memref<4x4xf32, #tpu.memory_space<smem>>
    %c1_40 = arith.constant 1 : index
    %c2_41 = arith.constant 2 : index
    %22 = memref.load %arg4[%c1_40, %c2_41] : memref<4x4xf32, #tpu.memory_space<smem>>
    %c1_42 = arith.constant 1 : index
    %c3_43 = arith.constant 3 : index
    %23 = memref.load %arg4[%c1_42, %c3_43] : memref<4x4xf32, #tpu.memory_space<smem>>
    %c2_44 = arith.constant 2 : index
    %c0_45 = arith.constant 0 : index
    %24 = memref.load %arg4[%c2_44, %c0_45] : memref<4x4xf32, #tpu.memory_space<smem>>
    %c2_46 = arith.constant 2 : index
    %c1_47 = arith.constant 1 : index
    %25 = memref.load %arg4[%c2_46, %c1_47] : memref<4x4xf32, #tpu.memory_space<smem>>
    %c2_48 = arith.constant 2 : index
    %c2_49 = arith.constant 2 : index
    %26 = memref.load %arg4[%c2_48, %c2_49] : memref<4x4xf32, #tpu.memory_space<smem>>
    %c2_50 = arith.constant 2 : index
    %c3_51 = arith.constant 3 : index
    %27 = memref.load %arg4[%c2_50, %c3_51] : memref<4x4xf32, #tpu.memory_space<smem>>
    %c3_52 = arith.constant 3 : index
    %c0_53 = arith.constant 0 : index
    %28 = memref.load %arg4[%c3_52, %c0_53] : memref<4x4xf32, #tpu.memory_space<smem>>
    %c3_54 = arith.constant 3 : index
    %c1_55 = arith.constant 1 : index
    %29 = memref.load %arg4[%c3_54, %c1_55] : memref<4x4xf32, #tpu.memory_space<smem>>
    %c3_56 = arith.constant 3 : index
    %c2_57 = arith.constant 2 : index
    %30 = memref.load %arg4[%c3_56, %c2_57] : memref<4x4xf32, #tpu.memory_space<smem>>
    %c3_58 = arith.constant 3 : index
    %c3_59 = arith.constant 3 : index
    %31 = memref.load %arg4[%c3_58, %c3_59] : memref<4x4xf32, #tpu.memory_space<smem>>
    %c0_60 = arith.constant 0 : index
    %32 = memref.load %arg3[%c0_60] : memref<4xf32, #tpu.memory_space<smem>>
    %c1_61 = arith.constant 1 : index
    %33 = memref.load %arg3[%c1_61] : memref<4xf32, #tpu.memory_space<smem>>
    %c2_62 = arith.constant 2 : index
    %34 = memref.load %arg3[%c2_62] : memref<4xf32, #tpu.memory_space<smem>>
    %c3_63 = arith.constant 3 : index
    %35 = memref.load %arg3[%c3_63] : memref<4xf32, #tpu.memory_space<smem>>
    %c0_64 = arith.constant 0 : index
    %36 = memref.load %arg5[%c0_64] : memref<4xf32, #tpu.memory_space<smem>>
    %c1_65 = arith.constant 1 : index
    %37 = memref.load %arg5[%c1_65] : memref<4xf32, #tpu.memory_space<smem>>
    %c2_66 = arith.constant 2 : index
    %38 = memref.load %arg5[%c2_66] : memref<4xf32, #tpu.memory_space<smem>>
    %c3_67 = arith.constant 3 : index
    %39 = memref.load %arg5[%c3_67] : memref<4xf32, #tpu.memory_space<smem>>
    %cst = arith.constant 0.000000e+00 : f32
    %40 = vector.broadcast %cst : f32 to vector<8x128xf32>
    %c0_i32 = arith.constant 0 : i32
    %c8_i32 = arith.constant 8 : i32
    %41 = arith.muli %c0_i32, %c8_i32 : i32
    %42 = tpu.assume_multiple %41, 8 : i32
    %c0_68 = arith.constant 0 : index
    %c0_69 = arith.constant 0 : index
    %43 = arith.index_cast %42 : i32 to index
    %c0_70 = arith.constant 0 : index
    %44 = vector.load %arg6[%c0_68, %c0_69, %43, %c0_70] : memref<1x4x8x128xf32, #tpu.memory_space<vmem>>, vector<1x1x8x128xf32>
    %45 = vector.shape_cast %44 : vector<1x1x8x128xf32> to vector<8x128xf32>
    %c0_71 = arith.constant 0 : index
    %c1_72 = arith.constant 1 : index
    %46 = arith.index_cast %42 : i32 to index
    %c0_73 = arith.constant 0 : index
    %47 = vector.load %arg6[%c0_71, %c1_72, %46, %c0_73] : memref<1x4x8x128xf32, #tpu.memory_space<vmem>>, vector<1x1x8x128xf32>
    %48 = vector.shape_cast %47 : vector<1x1x8x128xf32> to vector<8x128xf32>
    %c0_74 = arith.constant 0 : index
    %c2_75 = arith.constant 2 : index
    %49 = arith.index_cast %42 : i32 to index
    %c0_76 = arith.constant 0 : index
    %50 = vector.load %arg6[%c0_74, %c2_75, %49, %c0_76] : memref<1x4x8x128xf32, #tpu.memory_space<vmem>>, vector<1x1x8x128xf32>
    %51 = vector.shape_cast %50 : vector<1x1x8x128xf32> to vector<8x128xf32>
    %c0_77 = arith.constant 0 : index
    %c3_78 = arith.constant 3 : index
    %52 = arith.index_cast %42 : i32 to index
    %c0_79 = arith.constant 0 : index
    %53 = vector.load %arg6[%c0_77, %c3_78, %52, %c0_79] : memref<1x4x8x128xf32, #tpu.memory_space<vmem>>, vector<1x1x8x128xf32>
    %54 = vector.shape_cast %53 : vector<1x1x8x128xf32> to vector<8x128xf32>
    %c0_80 = arith.constant 0 : index
    %c0_81 = arith.constant 0 : index
    %55 = arith.index_cast %42 : i32 to index
    %c0_82 = arith.constant 0 : index
    %56 = vector.load %arg8[%c0_80, %c0_81, %55, %c0_82] : memref<1x4x8x128xf32, #tpu.memory_space<vmem>>, vector<1x1x8x128xf32>
    %57 = vector.shape_cast %56 : vector<1x1x8x128xf32> to vector<8x128xf32>
    %c0_83 = arith.constant 0 : index
    %c1_84 = arith.constant 1 : index
    %58 = arith.index_cast %42 : i32 to index
    %c0_85 = arith.constant 0 : index
    %59 = vector.load %arg8[%c0_83, %c1_84, %58, %c0_85] : memref<1x4x8x128xf32, #tpu.memory_space<vmem>>, vector<1x1x8x128xf32>
    %60 = vector.shape_cast %59 : vector<1x1x8x128xf32> to vector<8x128xf32>
    %c0_86 = arith.constant 0 : index
    %c2_87 = arith.constant 2 : index
    %61 = arith.index_cast %42 : i32 to index
    %c0_88 = arith.constant 0 : index
    %62 = vector.load %arg8[%c0_86, %c2_87, %61, %c0_88] : memref<1x4x8x128xf32, #tpu.memory_space<vmem>>, vector<1x1x8x128xf32>
    %63 = vector.shape_cast %62 : vector<1x1x8x128xf32> to vector<8x128xf32>
    %c0_89 = arith.constant 0 : index
    %c3_90 = arith.constant 3 : index
    %64 = arith.index_cast %42 : i32 to index
    %c0_91 = arith.constant 0 : index
    %65 = vector.load %arg8[%c0_89, %c3_90, %64, %c0_91] : memref<1x4x8x128xf32, #tpu.memory_space<vmem>>, vector<1x1x8x128xf32>
    %66 = vector.shape_cast %65 : vector<1x1x8x128xf32> to vector<8x128xf32>
    %c0_92 = arith.constant 0 : index
    %67 = arith.index_cast %42 : i32 to index
    %c0_93 = arith.constant 0 : index
    %68 = vector.load %arg7[%c0_92, %67, %c0_93] : memref<1x8x128xf32, #tpu.memory_space<vmem>>, vector<1x8x128xf32>
    %69 = vector.shape_cast %68 : vector<1x8x128xf32> to vector<8x128xf32>
    %c0_94 = arith.constant 0 : index
    %70 = arith.index_cast %42 : i32 to index
    %c0_95 = arith.constant 0 : index
    %71 = vector.load %arg9[%c0_94, %70, %c0_95] : memref<1x8x128xf32, #tpu.memory_space<vmem>>, vector<1x8x128xf32>
    %72 = vector.shape_cast %71 : vector<1x8x128xf32> to vector<8x128xf32>
    %73 = vector.broadcast %0 : f32 to vector<8x128xf32>
    %74 = arith.mulf %73, %45 : vector<8x128xf32>
    %75 = vector.broadcast %32 : f32 to vector<8x128xf32>
    %76 = arith.addf %74, %75 : vector<8x128xf32>
    %77 = vector.broadcast %16 : f32 to vector<8x128xf32>
    %78 = arith.mulf %77, %45 : vector<8x128xf32>
    %79 = vector.broadcast %36 : f32 to vector<8x128xf32>
    %80 = arith.addf %78, %79 : vector<8x128xf32>
    %81 = vector.broadcast %1 : f32 to vector<8x128xf32>
    %82 = arith.mulf %81, %48 : vector<8x128xf32>
    %83 = arith.addf %76, %82 : vector<8x128xf32>
    %84 = vector.broadcast %17 : f32 to vector<8x128xf32>
    %85 = arith.mulf %84, %48 : vector<8x128xf32>
    %86 = arith.addf %80, %85 : vector<8x128xf32>
    %87 = vector.broadcast %2 : f32 to vector<8x128xf32>
    %88 = arith.mulf %87, %51 : vector<8x128xf32>
    %89 = arith.addf %83, %88 : vector<8x128xf32>
    %90 = vector.broadcast %18 : f32 to vector<8x128xf32>
    %91 = arith.mulf %90, %51 : vector<8x128xf32>
    %92 = arith.addf %86, %91 : vector<8x128xf32>
    %93 = vector.broadcast %3 : f32 to vector<8x128xf32>
    %94 = arith.mulf %93, %54 : vector<8x128xf32>
    %95 = arith.addf %89, %94 : vector<8x128xf32>
    %96 = vector.broadcast %19 : f32 to vector<8x128xf32>
    %97 = arith.mulf %96, %54 : vector<8x128xf32>
    %98 = arith.addf %92, %97 : vector<8x128xf32>
    %99 = math.tanh %95 : vector<8x128xf32>
    %cst_96 = arith.constant 5.000000e-01 : f32
    %100 = vector.broadcast %cst_96 : f32 to vector<8x128xf32>
    %101 = arith.mulf %100, %99 : vector<8x128xf32>
    %cst_97 = arith.constant 5.000000e-01 : f32
    %102 = vector.broadcast %cst_97 : f32 to vector<8x128xf32>
    %103 = arith.addf %101, %102 : vector<8x128xf32>
    %104 = math.tanh %98 : vector<8x128xf32>
    %cst_98 = arith.constant 5.000000e-01 : f32
    %105 = vector.broadcast %cst_98 : f32 to vector<8x128xf32>
    %106 = arith.mulf %105, %104 : vector<8x128xf32>
    %cst_99 = arith.constant 5.000000e-01 : f32
    %107 = vector.broadcast %cst_99 : f32 to vector<8x128xf32>
    %108 = arith.addf %106, %107 : vector<8x128xf32>
    %109 = arith.mulf %103, %57 : vector<8x128xf32>
    %110 = arith.mulf %108, %45 : vector<8x128xf32>
    %111 = vector.broadcast %4 : f32 to vector<8x128xf32>
    %112 = arith.mulf %111, %45 : vector<8x128xf32>
    %113 = vector.broadcast %33 : f32 to vector<8x128xf32>
    %114 = arith.addf %112, %113 : vector<8x128xf32>
    %115 = vector.broadcast %20 : f32 to vector<8x128xf32>
    %116 = arith.mulf %115, %45 : vector<8x128xf32>
    %117 = vector.broadcast %37 : f32 to vector<8x128xf32>
    %118 = arith.addf %116, %117 : vector<8x128xf32>
    %119 = vector.broadcast %5 : f32 to vector<8x128xf32>
    %120 = arith.mulf %119, %48 : vector<8x128xf32>
    %121 = arith.addf %114, %120 : vector<8x128xf32>
    %122 = vector.broadcast %21 : f32 to vector<8x128xf32>
    %123 = arith.mulf %122, %48 : vector<8x128xf32>
    %124 = arith.addf %118, %123 : vector<8x128xf32>
    %125 = vector.broadcast %6 : f32 to vector<8x128xf32>
    %126 = arith.mulf %125, %51 : vector<8x128xf32>
    %127 = arith.addf %121, %126 : vector<8x128xf32>
    %128 = vector.broadcast %22 : f32 to vector<8x128xf32>
    %129 = arith.mulf %128, %51 : vector<8x128xf32>
    %130 = arith.addf %124, %129 : vector<8x128xf32>
    %131 = vector.broadcast %7 : f32 to vector<8x128xf32>
    %132 = arith.mulf %131, %54 : vector<8x128xf32>
    %133 = arith.addf %127, %132 : vector<8x128xf32>
    %134 = vector.broadcast %23 : f32 to vector<8x128xf32>
    %135 = arith.mulf %134, %54 : vector<8x128xf32>
    %136 = arith.addf %130, %135 : vector<8x128xf32>
    %137 = math.tanh %133 : vector<8x128xf32>
    %cst_100 = arith.constant 5.000000e-01 : f32
    %138 = vector.broadcast %cst_100 : f32 to vector<8x128xf32>
    %139 = arith.mulf %138, %137 : vector<8x128xf32>
    %cst_101 = arith.constant 5.000000e-01 : f32
    %140 = vector.broadcast %cst_101 : f32 to vector<8x128xf32>
    %141 = arith.addf %139, %140 : vector<8x128xf32>
    %142 = math.tanh %136 : vector<8x128xf32>
    %cst_102 = arith.constant 5.000000e-01 : f32
    %143 = vector.broadcast %cst_102 : f32 to vector<8x128xf32>
    %144 = arith.mulf %143, %142 : vector<8x128xf32>
    %cst_103 = arith.constant 5.000000e-01 : f32
    %145 = vector.broadcast %cst_103 : f32 to vector<8x128xf32>
    %146 = arith.addf %144, %145 : vector<8x128xf32>
    %147 = arith.mulf %141, %60 : vector<8x128xf32>
    %148 = arith.mulf %146, %48 : vector<8x128xf32>
    %149 = vector.broadcast %8 : f32 to vector<8x128xf32>
    %150 = arith.mulf %149, %45 : vector<8x128xf32>
    %151 = vector.broadcast %34 : f32 to vector<8x128xf32>
    %152 = arith.addf %150, %151 : vector<8x128xf32>
    %153 = vector.broadcast %24 : f32 to vector<8x128xf32>
    %154 = arith.mulf %153, %45 : vector<8x128xf32>
    %155 = vector.broadcast %38 : f32 to vector<8x128xf32>
    %156 = arith.addf %154, %155 : vector<8x128xf32>
    %157 = vector.broadcast %9 : f32 to vector<8x128xf32>
    %158 = arith.mulf %157, %48 : vector<8x128xf32>
    %159 = arith.addf %152, %158 : vector<8x128xf32>
    %160 = vector.broadcast %25 : f32 to vector<8x128xf32>
    %161 = arith.mulf %160, %48 : vector<8x128xf32>
    %162 = arith.addf %156, %161 : vector<8x128xf32>
    %163 = vector.broadcast %10 : f32 to vector<8x128xf32>
    %164 = arith.mulf %163, %51 : vector<8x128xf32>
    %165 = arith.addf %159, %164 : vector<8x128xf32>
    %166 = vector.broadcast %26 : f32 to vector<8x128xf32>
    %167 = arith.mulf %166, %51 : vector<8x128xf32>
    %168 = arith.addf %162, %167 : vector<8x128xf32>
    %169 = vector.broadcast %11 : f32 to vector<8x128xf32>
    %170 = arith.mulf %169, %54 : vector<8x128xf32>
    %171 = arith.addf %165, %170 : vector<8x128xf32>
    %172 = vector.broadcast %27 : f32 to vector<8x128xf32>
    %173 = arith.mulf %172, %54 : vector<8x128xf32>
    %174 = arith.addf %168, %173 : vector<8x128xf32>
    %175 = math.tanh %171 : vector<8x128xf32>
    %cst_104 = arith.constant 5.000000e-01 : f32
    %176 = vector.broadcast %cst_104 : f32 to vector<8x128xf32>
    %177 = arith.mulf %176, %175 : vector<8x128xf32>
    %cst_105 = arith.constant 5.000000e-01 : f32
    %178 = vector.broadcast %cst_105 : f32 to vector<8x128xf32>
    %179 = arith.addf %177, %178 : vector<8x128xf32>
    %180 = math.tanh %174 : vector<8x128xf32>
    %cst_106 = arith.constant 5.000000e-01 : f32
    %181 = vector.broadcast %cst_106 : f32 to vector<8x128xf32>
    %182 = arith.mulf %181, %180 : vector<8x128xf32>
    %cst_107 = arith.constant 5.000000e-01 : f32
    %183 = vector.broadcast %cst_107 : f32 to vector<8x128xf32>
    %184 = arith.addf %182, %183 : vector<8x128xf32>
    %185 = arith.mulf %179, %63 : vector<8x128xf32>
    %186 = arith.mulf %184, %51 : vector<8x128xf32>
    %187 = vector.broadcast %12 : f32 to vector<8x128xf32>
    %188 = arith.mulf %187, %45 : vector<8x128xf32>
    %189 = vector.broadcast %35 : f32 to vector<8x128xf32>
    %190 = arith.addf %188, %189 : vector<8x128xf32>
    %191 = vector.broadcast %28 : f32 to vector<8x128xf32>
    %192 = arith.mulf %191, %45 : vector<8x128xf32>
    %193 = vector.broadcast %39 : f32 to vector<8x128xf32>
    %194 = arith.addf %192, %193 : vector<8x128xf32>
    %195 = vector.broadcast %13 : f32 to vector<8x128xf32>
    %196 = arith.mulf %195, %48 : vector<8x128xf32>
    %197 = arith.addf %190, %196 : vector<8x128xf32>
    %198 = vector.broadcast %29 : f32 to vector<8x128xf32>
    %199 = arith.mulf %198, %48 : vector<8x128xf32>
    %200 = arith.addf %194, %199 : vector<8x128xf32>
    %201 = vector.broadcast %14 : f32 to vector<8x128xf32>
    %202 = arith.mulf %201, %51 : vector<8x128xf32>
    %203 = arith.addf %197, %202 : vector<8x128xf32>
    %204 = vector.broadcast %30 : f32 to vector<8x128xf32>
    %205 = arith.mulf %204, %51 : vector<8x128xf32>
    %206 = arith.addf %200, %205 : vector<8x128xf32>
    %207 = vector.broadcast %15 : f32 to vector<8x128xf32>
    %208 = arith.mulf %207, %54 : vector<8x128xf32>
    %209 = arith.addf %203, %208 : vector<8x128xf32>
    %210 = vector.broadcast %31 : f32 to vector<8x128xf32>
    %211 = arith.mulf %210, %54 : vector<8x128xf32>
    %212 = arith.addf %206, %211 : vector<8x128xf32>
    %213 = math.tanh %209 : vector<8x128xf32>
    %cst_108 = arith.constant 5.000000e-01 : f32
    %214 = vector.broadcast %cst_108 : f32 to vector<8x128xf32>
    %215 = arith.mulf %214, %213 : vector<8x128xf32>
    %cst_109 = arith.constant 5.000000e-01 : f32
    %216 = vector.broadcast %cst_109 : f32 to vector<8x128xf32>
    %217 = arith.addf %215, %216 : vector<8x128xf32>
    %218 = math.tanh %212 : vector<8x128xf32>
    %cst_110 = arith.constant 5.000000e-01 : f32
    %219 = vector.broadcast %cst_110 : f32 to vector<8x128xf32>
    %220 = arith.mulf %219, %218 : vector<8x128xf32>
    %cst_111 = arith.constant 5.000000e-01 : f32
    %221 = vector.broadcast %cst_111 : f32 to vector<8x128xf32>
    %222 = arith.addf %220, %221 : vector<8x128xf32>
    %223 = arith.mulf %217, %66 : vector<8x128xf32>
    %224 = arith.mulf %222, %54 : vector<8x128xf32>
    %225 = arith.addf %109, %147 : vector<8x128xf32>
    %226 = arith.addf %110, %148 : vector<8x128xf32>
    %227 = arith.addf %225, %185 : vector<8x128xf32>
    %228 = arith.addf %226, %186 : vector<8x128xf32>
    %229 = arith.addf %227, %223 : vector<8x128xf32>
    %230 = arith.addf %228, %224 : vector<8x128xf32>
    %231 = arith.subf %229, %72 : vector<8x128xf32>
    %232 = math.absf %231 : vector<8x128xf32>
    %233 = arith.addf %40, %232 : vector<8x128xf32>
    %234 = arith.subf %230, %69 : vector<8x128xf32>
    %235 = math.absf %234 : vector<8x128xf32>
    %236 = arith.addf %40, %235 : vector<8x128xf32>
    %237 = arith.subf %229, %109 : vector<8x128xf32>
    %238 = arith.subf %72, %237 : vector<8x128xf32>
    %cst_112 = arith.constant 9.99999999E-24 : f32
    %239 = vector.broadcast %cst_112 : f32 to vector<8x128xf32>
    %240 = arith.addf %103, %239 : vector<8x128xf32>
    %241 = arith.divf %238, %240 : vector<8x128xf32>
    %242 = arith.subf %230, %110 : vector<8x128xf32>
    %243 = arith.subf %69, %242 : vector<8x128xf32>
    %cst_113 = arith.constant 9.99999999E-24 : f32
    %244 = vector.broadcast %cst_113 : f32 to vector<8x128xf32>
    %245 = arith.addf %108, %244 : vector<8x128xf32>
    %246 = arith.divf %243, %245 : vector<8x128xf32>
    %cst_114 = arith.constant 0.000000e+00 : f32
    %cst_115 = arith.constant 1.000000e+00 : f32
    %247 = vector.broadcast %cst_114 : f32 to vector<8x128xf32>
    %248 = arith.maximumf %247, %241 : vector<8x128xf32>
    %249 = vector.broadcast %cst_115 : f32 to vector<8x128xf32>
    %250 = arith.minimumf %249, %248 : vector<8x128xf32>
    %251 = arith.subf %250, %57 : vector<8x128xf32>
    %252 = math.absf %251 : vector<8x128xf32>
    %253 = arith.addf %40, %252 : vector<8x128xf32>
    %cst_116 = arith.constant 0.000000e+00 : f32
    %cst_117 = arith.constant 1.000000e+00 : f32
    %254 = vector.broadcast %cst_116 : f32 to vector<8x128xf32>
    %255 = arith.maximumf %254, %246 : vector<8x128xf32>
    %256 = vector.broadcast %cst_117 : f32 to vector<8x128xf32>
    %257 = arith.minimumf %256, %255 : vector<8x128xf32>
    %258 = arith.subf %257, %45 : vector<8x128xf32>
    %259 = math.absf %258 : vector<8x128xf32>
    %260 = arith.addf %40, %259 : vector<8x128xf32>
    %261 = arith.subf %229, %147 : vector<8x128xf32>
    %262 = arith.subf %72, %261 : vector<8x128xf32>
    %cst_118 = arith.constant 9.99999999E-24 : f32
    %263 = vector.broadcast %cst_118 : f32 to vector<8x128xf32>
    %264 = arith.addf %141, %263 : vector<8x128xf32>
    %265 = arith.divf %262, %264 : vector<8x128xf32>
    %266 = arith.subf %230, %148 : vector<8x128xf32>
    %267 = arith.subf %69, %266 : vector<8x128xf32>
    %cst_119 = arith.constant 9.99999999E-24 : f32
    %268 = vector.broadcast %cst_119 : f32 to vector<8x128xf32>
    %269 = arith.addf %146, %268 : vector<8x128xf32>
    %270 = arith.divf %267, %269 : vector<8x128xf32>
    %cst_120 = arith.constant 0.000000e+00 : f32
    %cst_121 = arith.constant 1.000000e+00 : f32
    %271 = vector.broadcast %cst_120 : f32 to vector<8x128xf32>
    %272 = arith.maximumf %271, %265 : vector<8x128xf32>
    %273 = vector.broadcast %cst_121 : f32 to vector<8x128xf32>
    %274 = arith.minimumf %273, %272 : vector<8x128xf32>
    %275 = arith.subf %274, %60 : vector<8x128xf32>
    %276 = math.absf %275 : vector<8x128xf32>
    %277 = arith.addf %253, %276 : vector<8x128xf32>
    %cst_122 = arith.constant 0.000000e+00 : f32
    %cst_123 = arith.constant 1.000000e+00 : f32
    %278 = vector.broadcast %cst_122 : f32 to vector<8x128xf32>
    %279 = arith.maximumf %278, %270 : vector<8x128xf32>
    %280 = vector.broadcast %cst_123 : f32 to vector<8x128xf32>
    %281 = arith.minimumf %280, %279 : vector<8x128xf32>
    %282 = arith.subf %281, %48 : vector<8x128xf32>
    %283 = math.absf %282 : vector<8x128xf32>
    %284 = arith.addf %260, %283 : vector<8x128xf32>
    %285 = arith.subf %229, %185 : vector<8x128xf32>
    %286 = arith.subf %72, %285 : vector<8x128xf32>
    %cst_124 = arith.constant 9.99999999E-24 : f32
    %287 = vector.broadcast %cst_124 : f32 to vector<8x128xf32>
    %288 = arith.addf %179, %287 : vector<8x128xf32>
    %289 = arith.divf %286, %288 : vector<8x128xf32>
    %290 = arith.subf %230, %186 : vector<8x128xf32>
    %291 = arith.subf %69, %290 : vector<8x128xf32>
    %cst_125 = arith.constant 9.99999999E-24 : f32
    %292 = vector.broadcast %cst_125 : f32 to vector<8x128xf32>
    %293 = arith.addf %184, %292 : vector<8x128xf32>
    %294 = arith.divf %291, %293 : vector<8x128xf32>
    %cst_126 = arith.constant 0.000000e+00 : f32
    %cst_127 = arith.constant 1.000000e+00 : f32
    %295 = vector.broadcast %cst_126 : f32 to vector<8x128xf32>
    %296 = arith.maximumf %295, %289 : vector<8x128xf32>
    %297 = vector.broadcast %cst_127 : f32 to vector<8x128xf32>
    %298 = arith.minimumf %297, %296 : vector<8x128xf32>
    %299 = arith.subf %298, %63 : vector<8x128xf32>
    %300 = math.absf %299 : vector<8x128xf32>
    %301 = arith.addf %277, %300 : vector<8x128xf32>
    %cst_128 = arith.constant 0.000000e+00 : f32
    %cst_129 = arith.constant 1.000000e+00 : f32
    %302 = vector.broadcast %cst_128 : f32 to vector<8x128xf32>
    %303 = arith.maximumf %302, %294 : vector<8x128xf32>
    %304 = vector.broadcast %cst_129 : f32 to vector<8x128xf32>
    %305 = arith.minimumf %304, %303 : vector<8x128xf32>
    %306 = arith.subf %305, %51 : vector<8x128xf32>
    %307 = math.absf %306 : vector<8x128xf32>
    %308 = arith.addf %284, %307 : vector<8x128xf32>
    %309 = arith.subf %229, %223 : vector<8x128xf32>
    %310 = arith.subf %72, %309 : vector<8x128xf32>
    %cst_130 = arith.constant 9.99999999E-24 : f32
    %311 = vector.broadcast %cst_130 : f32 to vector<8x128xf32>
    %312 = arith.addf %217, %311 : vector<8x128xf32>
    %313 = arith.divf %310, %312 : vector<8x128xf32>
    %314 = arith.subf %230, %224 : vector<8x128xf32>
    %315 = arith.subf %69, %314 : vector<8x128xf32>
    %cst_131 = arith.constant 9.99999999E-24 : f32
    %316 = vector.broadcast %cst_131 : f32 to vector<8x128xf32>
    %317 = arith.addf %222, %316 : vector<8x128xf32>
    %318 = arith.divf %315, %317 : vector<8x128xf32>
    %cst_132 = arith.constant 0.000000e+00 : f32
    %cst_133 = arith.constant 1.000000e+00 : f32
    %319 = vector.broadcast %cst_132 : f32 to vector<8x128xf32>
    %320 = arith.maximumf %319, %313 : vector<8x128xf32>
    %321 = vector.broadcast %cst_133 : f32 to vector<8x128xf32>
    %322 = arith.minimumf %321, %320 : vector<8x128xf32>
    %323 = arith.subf %322, %66 : vector<8x128xf32>
    %324 = math.absf %323 : vector<8x128xf32>
    %325 = arith.addf %301, %324 : vector<8x128xf32>
    %cst_134 = arith.constant 0.000000e+00 : f32
    %cst_135 = arith.constant 1.000000e+00 : f32
    %326 = vector.broadcast %cst_134 : f32 to vector<8x128xf32>
    %327 = arith.maximumf %326, %318 : vector<8x128xf32>
    %328 = vector.broadcast %cst_135 : f32 to vector<8x128xf32>
    %329 = arith.minimumf %328, %327 : vector<8x128xf32>
    %330 = arith.subf %329, %54 : vector<8x128xf32>
    %331 = math.absf %330 : vector<8x128xf32>
    %332 = arith.addf %308, %331 : vector<8x128xf32>
    %c1_i32 = arith.constant 1 : i32
    %c0_i32_136 = arith.constant 0 : i32
    %333 = arith.cmpi eq, %arg1, %c0_i32_136 : i32
    %334 = arith.extui %333 : i1 to i32
    %c0_i32_137 = arith.constant 0 : i32
    %335 = arith.cmpi ne, %334, %c0_i32_137 : i32
    scf.if %335 {
      %cst_170 = arith.constant 0.000000e+00 : f32
      %360 = vector.broadcast %cst_170 : f32 to vector<1x4x8x128xf32>
      %c0_171 = arith.constant 0 : index
      %c0_172 = arith.constant 0 : index
      %c0_173 = arith.constant 0 : index
      %c0_174 = arith.constant 0 : index
      %361 = vector.load %arg10[%c0_171, %c0_172, %c0_173, %c0_174] : memref<1x4x8x128xf32, #tpu.memory_space<vmem>>, vector<1x4x8x128xf32>
      tpu.vector_store %arg10[%c0_171, %c0_172, %c0_173, %c0_174], %360 {strides = array<i32>} : memref<1x4x8x128xf32, #tpu.memory_space<vmem>>, vector<1x4x8x128xf32>,
    } else {
    }
    %c0_138 = arith.constant 0 : index
    %c0_139 = arith.constant 0 : index
    %c0_140 = arith.constant 0 : index
    %c0_141 = arith.constant 0 : index
    %336 = vector.load %arg10[%c0_138, %c0_139, %c0_140, %c0_141] : memref<1x4x8x128xf32, #tpu.memory_space<vmem>>, vector<1x1x8x128xf32>
    %337 = vector.shape_cast %336 : vector<1x1x8x128xf32> to vector<8x128xf32>
    %338 = arith.addf %337, %233 : vector<8x128xf32>
    %c0_142 = arith.constant 0 : index
    %c0_143 = arith.constant 0 : index
    %c0_144 = arith.constant 0 : index
    %c0_145 = arith.constant 0 : index
    %339 = vector.load %arg10[%c0_142, %c0_143, %c0_144, %c0_145] : memref<1x4x8x128xf32, #tpu.memory_space<vmem>>, vector<1x1x8x128xf32>
    %340 = vector.shape_cast %339 : vector<1x1x8x128xf32> to vector<8x128xf32>
    %341 = vector.shape_cast %338 : vector<8x128xf32> to vector<1x1x8x128xf32>
    tpu.vector_store %arg10[%c0_142, %c0_143, %c0_144, %c0_145], %341 {strides = array<i32>} : memref<1x4x8x128xf32, #tpu.memory_space<vmem>>, vector<1x1x8x128xf32>,
    %c0_146 = arith.constant 0 : index
    %c1_147 = arith.constant 1 : index
    %c0_148 = arith.constant 0 : index
    %c0_149 = arith.constant 0 : index
    %342 = vector.load %arg10[%c0_146, %c1_147, %c0_148, %c0_149] : memref<1x4x8x128xf32, #tpu.memory_space<vmem>>, vector<1x1x8x128xf32>
    %343 = vector.shape_cast %342 : vector<1x1x8x128xf32> to vector<8x128xf32>
    %344 = arith.addf %343, %236 : vector<8x128xf32>
    %c0_150 = arith.constant 0 : index
    %c1_151 = arith.constant 1 : index
    %c0_152 = arith.constant 0 : index
    %c0_153 = arith.constant 0 : index
    %345 = vector.load %arg10[%c0_150, %c1_151, %c0_152, %c0_153] : memref<1x4x8x128xf32, #tpu.memory_space<vmem>>, vector<1x1x8x128xf32>
    %346 = vector.shape_cast %345 : vector<1x1x8x128xf32> to vector<8x128xf32>
    %347 = vector.shape_cast %344 : vector<8x128xf32> to vector<1x1x8x128xf32>
    tpu.vector_store %arg10[%c0_150, %c1_151, %c0_152, %c0_153], %347 {strides = array<i32>} : memref<1x4x8x128xf32, #tpu.memory_space<vmem>>, vector<1x1x8x128xf32>,
    %c0_154 = arith.constant 0 : index
    %c2_155 = arith.constant 2 : index
    %c0_156 = arith.constant 0 : index
    %c0_157 = arith.constant 0 : index
    %348 = vector.load %arg10[%c0_154, %c2_155, %c0_156, %c0_157] : memref<1x4x8x128xf32, #tpu.memory_space<vmem>>, vector<1x1x8x128xf32>
    %349 = vector.shape_cast %348 : vector<1x1x8x128xf32> to vector<8x128xf32>
    %350 = arith.addf %349, %325 : vector<8x128xf32>
    %c0_158 = arith.constant 0 : index
    %c2_159 = arith.constant 2 : index
    %c0_160 = arith.constant 0 : index
    %c0_161 = arith.constant 0 : index
    %351 = vector.load %arg10[%c0_158, %c2_159, %c0_160, %c0_161] : memref<1x4x8x128xf32, #tpu.memory_space<vmem>>, vector<1x1x8x128xf32>
    %352 = vector.shape_cast %351 : vector<1x1x8x128xf32> to vector<8x128xf32>
    %353 = vector.shape_cast %350 : vector<8x128xf32> to vector<1x1x8x128xf32>
    tpu.vector_store %arg10[%c0_158, %c2_159, %c0_160, %c0_161], %353 {strides = array<i32>} : memref<1x4x8x128xf32, #tpu.memory_space<vmem>>, vector<1x1x8x128xf32>,
    %c0_162 = arith.constant 0 : index
    %c3_163 = arith.constant 3 : index
    %c0_164 = arith.constant 0 : index
    %c0_165 = arith.constant 0 : index
    %354 = vector.load %arg10[%c0_162, %c3_163, %c0_164, %c0_165] : memref<1x4x8x128xf32, #tpu.memory_space<vmem>>, vector<1x1x8x128xf32>
    %355 = vector.shape_cast %354 : vector<1x1x8x128xf32> to vector<8x128xf32>
    %356 = arith.addf %355, %332 : vector<8x128xf32>
    %c0_166 = arith.constant 0 : index
    %c3_167 = arith.constant 3 : index
    %c0_168 = arith.constant 0 : index
    %c0_169 = arith.constant 0 : index
    %357 = vector.load %arg10[%c0_166, %c3_167, %c0_168, %c0_169] : memref<1x4x8x128xf32, #tpu.memory_space<vmem>>, vector<1x1x8x128xf32>
    %358 = vector.shape_cast %357 : vector<1x1x8x128xf32> to vector<8x128xf32>
    %359 = vector.shape_cast %356 : vector<8x128xf32> to vector<1x1x8x128xf32>
    tpu.vector_store %arg10[%c0_166, %c3_167, %c0_168, %c0_169], %359 {strides = array<i32>} : memref<1x4x8x128xf32, #tpu.memory_space<vmem>>, vector<1x1x8x128xf32>,
    return
  }
  func.func @transform_0(%arg0: i32, %arg1: i32) -> (i32, i32) {
    %c0_i32 = arith.constant 0 : i32
    %c0_i32_0 = arith.constant 0 : i32
    %c0_i32_1 = arith.constant 0 : i32
    return %c0_i32, %c0_i32_0 : i32, i32
  }
  func.func @transform_1(%arg0: i32, %arg1: i32) -> i32 {
    %c0_i32 = arith.constant 0 : i32
    %c0_i32_0 = arith.constant 0 : i32
    return %c0_i32 : i32
  }
  func.func @transform_2(%arg0: i32, %arg1: i32) -> (i32, i32) {
    %c0_i32 = arith.constant 0 : i32
    %c0_i32_0 = arith.constant 0 : i32
    %c0_i32_1 = arith.constant 0 : i32
    return %c0_i32, %c0_i32_0 : i32, i32
  }
  func.func @transform_3(%arg0: i32, %arg1: i32) -> i32 {
    %c0_i32 = arith.constant 0 : i32
    %c0_i32_0 = arith.constant 0 : i32
    return %c0_i32 : i32
  }
  func.func @transform_4(%arg0: i32, %arg1: i32) -> (i32, i32, i32, i32) {
    %c0_i32 = arith.constant 0 : i32
    %c0_i32_0 = arith.constant 0 : i32
    %c0_i32_1 = arith.constant 0 : i32
    return %arg0, %c0_i32, %arg1, %c0_i32_0 : i32, i32, i32, i32
  }
  func.func @transform_5(%arg0: i32, %arg1: i32) -> (i32, i32, i32) {
    %c0_i32 = arith.constant 0 : i32
    %c0_i32_0 = arith.constant 0 : i32
    return %arg0, %arg1, %c0_i32 : i32, i32, i32
  }
  func.func @transform_6(%arg0: i32, %arg1: i32) -> (i32, i32, i32, i32) {
    %c0_i32 = arith.constant 0 : i32
    %c0_i32_0 = arith.constant 0 : i32
    %c0_i32_1 = arith.constant 0 : i32
    return %arg0, %c0_i32, %arg1, %c0_i32_0 : i32, i32, i32, i32
  }
  func.func @transform_7(%arg0: i32, %arg1: i32) -> (i32, i32, i32) {
    %c0_i32 = arith.constant 0 : i32
    %c0_i32_0 = arith.constant 0 : i32
    return %arg0, %arg1, %c0_i32 : i32, i32, i32
  }
  func.func @transform_8(%arg0: i32, %arg1: i32) -> (i32, i32, i32, i32) {
    %c0_i32 = arith.constant 0 : i32
    %c0_i32_0 = arith.constant 0 : i32
    %c0_i32_1 = arith.constant 0 : i32
    %c0_i32_2 = arith.constant 0 : i32
    return %arg0, %c0_i32, %c0_i32_0, %c0_i32_1 : i32, i32, i32, i32
  }
}

</mosaic_0001>

<llo_original>
// kernel: tpu_custom_call.1
$region0: #{tpu_custom_call.1}
  #allocation0 [shape = 'u32[]', space=smem, size = 0x4, offset = 0x4, fixed_abs, tag = 'smem constant byte address 0x4 - core index']
  #allocation1 [shape = 'u32[144,128]{1,0:T(1,128)}', space=vmem, size = 0x12000, scoped, tag = 'internal scratch']
  %s0 = inlined_call_operand.hbm [shape: f32[4,4], index: 0, kind: input, shape index: {}]
  %s1 = inlined_call_operand.vmem [shape: f32[4], index: 1, kind: input, shape index: {}]
  %s2 = inlined_call_operand.hbm [shape: f32[4,4], index: 2, kind: input, shape index: {}]
  %s3 = inlined_call_operand.vmem [shape: f32[4], index: 3, kind: input, shape index: {}]
  %s4 = inlined_call_operand.hbm [shape: f32[2,4,8,128], index: 4, kind: input, shape index: {}]
  %s5 = inlined_call_operand.hbm [shape: f32[2,8,128], index: 5, kind: input, shape index: {}]
  %s6 = inlined_call_operand.hbm [shape: f32[2,4,8,128], index: 6, kind: input, shape index: {}]
  %s7 = inlined_call_operand.hbm [shape: f32[2,8,128], index: 7, kind: input, shape index: {}]
  %s8 = inlined_call_operand.hbm [shape: f32[2,4,8,128], index: 8, kind: output, shape index: {}]
  %s9 = sld [smem:[#allocation0]]
  $region101: #{tpu_custom_call.1} parent=0
    _
  %s11 = ssub.s32 1, %s9
  %s12 = scalar_select 0, %s11, %s9
  $region1: #{tpu_custom_call.1} parent=0
    #allocation2 [shape = 'u8[2048]{0}', space=smem, size = 0x800, scoped, tag = 'input window, operand 0, single buffered']
    #allocation3 [shape = 's32[2]{0}', space=sflag, size = 0x8, scoped, tag = 'scoped memory for tpu_custom_call.1']
    #allocation4 [shape = 's32[2]{0}', space=sflag, size = 0x8, scoped, tag = 'scoped memory for tpu_custom_call.1']
    #allocation5 [shape = 's32[2]{0}', space=sflag, size = 0x8, scoped, tag = 'scoped memory for tpu_custom_call.1']
    #allocation6 [shape = 's32[2]{0}', space=sflag, size = 0x8, scoped, tag = 'scoped memory for tpu_custom_call.1']
    #allocation7 [shape = 'u8[512]{0}', space=smem, size = 0x200, scoped, tag = 'input window, operand 1, single buffered']
    #allocation8 [shape = 'u8[2048]{0}', space=smem, size = 0x800, scoped, tag = 'input window, operand 2, single buffered']
    #allocation9 [shape = 's32[1]{0}', space=sflag, size = 0x4, scoped, tag = 'scoped memory for tpu_custom_call.1']
    #allocation10 [shape = 'u8[512]{0}', space=smem, size = 0x200, scoped, tag = 'input window, operand 3, single buffered']
    #allocation11 [shape = 's32[1]{0}', space=sflag, size = 0x4, scoped, tag = 'scoped memory for tpu_custom_call.1']
    #allocation12 [shape = 'u8[32768]{0}', space=vmem, size = 0x8000, scoped, tag = 'input window, operand 4']
    #allocation13 [shape = 'u8[8192]{0}', space=vmem, size = 0x2000, scoped, tag = 'input window, operand 5']
    #allocation14 [shape = 's32[2]{0}', space=sflag, size = 0x8, scoped, tag = 'scoped memory for tpu_custom_call.1']
    #allocation15 [shape = 'u8[32768]{0}', space=vmem, size = 0x8000, scoped, tag = 'input window, operand 6']
    #allocation16 [shape = 'u8[8192]{0}', space=vmem, size = 0x2000, scoped, tag = 'input window, operand 7']
    #allocation17 [shape = 's32[2]{0}', space=sflag, size = 0x8, scoped, tag = 'scoped memory for tpu_custom_call.1']
    #allocation18 [shape = 'u8[32768]{0}', space=vmem, size = 0x8000, scoped, tag = 'output window, operand 0']
    %13 = vsyncpa [#allocation5], 0
    %14 = vsyncpa [#allocation6], 0
    %15 = vsyncpa [#allocation9], 0
    %16 = vsyncpa [#allocation11], 0
    %17 = vsyncpa [#allocation3], 0
    %s18 = scalar_lea.sflag [#allocation3], 1
    %19 = vsyncpa %s18, 0
    %20 = vsyncpa [#allocation14], 0
    %s21 = scalar_lea.sflag [#allocation14], 1
    %22 = vsyncpa %s21, 0
    %23 = vsyncpa [#allocation17], 0
    %s24 = scalar_lea.sflag [#allocation17], 1
    %25 = vsyncpa %s24, 0
    %26 = vsyncpa [#allocation4], 0
    %s27 = scalar_lea.sflag [#allocation4], 1
    %28 = vsyncpa %s27, 0
    loop: start=0, step=1, limit=4
    $region2: #{tpu_custom_call.1} parent=1 // loop_pre_header
      _
    $region3: #{tpu_custom_call.1} parent=1 // loop_header
      %s30 = sphi 0, %s34
      %p31 = scmp.ge.s32.totalorder %s30, 4
      %s37 = sphi 0, %s49
      %s38 = sphi 0, %s45
      %s39 = sphi 0, %s37
      %s40 = sphi 0, %s38
      %s41 = sphi 0, %s39
      %s42 = sphi 0, %s40
      %s50 = sphi 0, %s50
      %s52 = sphi 0, %s50
      %s53 = sphi 0, %s52
      %s67 = sphi 0, %s53
      %s71 = sphi 0, %s71
      %s73 = sphi 0, %s71
      %s74 = sphi 0, %s73
      %s88 = sphi 0, %s74
      %s92 = sphi 0, %s92
      %s94 = sphi 0, %s92
      %s95 = sphi 0, %s94
      %s109 = sphi 0, %s95
      %s113 = sphi 0, %s113
      %s115 = sphi 0, %s113
      %s116 = sphi 0, %s115
      %s130 = sphi 0, %s116
      %s138 = sphi 0, %s140
      %s141 = sphi 0, %s138
      %s142 = sphi 0, %s141
      %s158 = sphi 0, %s142
      %s166 = sphi 0, %s168
      %s169 = sphi 0, %s166
      %s170 = sphi 0, %s169
      %s186 = sphi 0, %s170
      %s194 = sphi 0, %s196
      %s197 = sphi 0, %s194
      %s198 = sphi 0, %s197
      %s214 = sphi 0, %s198
      %s222 = sphi 0, %s224
      %s225 = sphi 0, %s222
      %s226 = sphi 0, %s225
      %s242 = sphi 0, %s226
      %s248 = sphi 0, %s250
      %s251 = sphi 0, %s248
      %s252 = sphi 0, %s251
      %s268 = sphi 0, %s252
    $region4: #{tpu_custom_call.1} parent=1 // loop_header_branch
      %33 = sbr.rel (%p31) target = $region8
    $region5: #{tpu_custom_call.1} parent=1 // loop_body
      %s35 = ssub.s32 %s30, 1
      %s36 = ssub.s32 %s30, 2
      %s43 = sadd.s32 1, %s38
      %p44 = scmp.ge.s32.totalorder %s43, 1
      %s45 = scalar_select %p44, 0, %s43
      %s46 = sadd.s32 1, %s37
      %s47 = scalar_select %p44, %s46, %s37
      %p48 = scmp.ge.s32.totalorder %s47, 2
      %s49 = scalar_select %p48, 0, %s47
      %s51 = sadd.s32 %s50, 1
      %p54 = scmp.eq.s32.totalorder %s30, 1
      %p55 = scmp.ne.s32.totalorder %s50, %s52
      %p56 = scmp.eq.s32.totalorder %s30, 0
      %p57 = por %p55, %p56
      %p58 = scmp.ne.s32.totalorder %s50, %s52
      %p59 = scmp.eq.s32.totalorder %s35, 1
      %p60 = por %p58, %p59
      %p61 = scmp.ne.s32.totalorder %s52, %s53
      %p62 = scmp.eq.s32.totalorder %s35, 0
      %p63 = por %p61, %p62
      %p64 = scmp.ne.s32.totalorder %s52, %s53
      %p65 = scmp.eq.s32.totalorder %s36, 1
      %p66 = por %p64, %p65
      %p68 = scmp.ne.s32.totalorder %s53, %s67
      %p69 = scmp.eq.s32.totalorder %s36, 0
      %p70 = por %p68, %p69
      %s72 = sadd.s32 %s71, 1
      %p75 = scmp.eq.s32.totalorder %s30, 1
      %p76 = scmp.ne.s32.totalorder %s71, %s73
      %p77 = scmp.eq.s32.totalorder %s30, 0
      %p78 = por %p76, %p77
      %p79 = scmp.ne.s32.totalorder %s71, %s73
      %p80 = scmp.eq.s32.totalorder %s35, 1
      %p81 = por %p79, %p80
      %p82 = scmp.ne.s32.totalorder %s73, %s74
      %p83 = scmp.eq.s32.totalorder %s35, 0
      %p84 = por %p82, %p83
      %p85 = scmp.ne.s32.totalorder %s73, %s74
      %p86 = scmp.eq.s32.totalorder %s36, 1
      %p87 = por %p85, %p86
      %p89 = scmp.ne.s32.totalorder %s74, %s88
      %p90 = scmp.eq.s32.totalorder %s36, 0
      %p91 = por %p89, %p90
      %s93 = sadd.s32 %s92, 1
      %p96 = scmp.eq.s32.totalorder %s30, 1
      %p97 = scmp.ne.s32.totalorder %s92, %s94
      %p98 = scmp.eq.s32.totalorder %s30, 0
      %p99 = por %p97, %p98
      %p100 = scmp.ne.s32.totalorder %s92, %s94
      %p101 = scmp.eq.s32.totalorder %s35, 1
      %p102 = por %p100, %p101
      %p103 = scmp.ne.s32.totalorder %s94, %s95
      %p104 = scmp.eq.s32.totalorder %s35, 0
      %p105 = por %p103, %p104
      %p106 = scmp.ne.s32.totalorder %s94, %s95
      %p107 = scmp.eq.s32.totalorder %s36, 1
      %p108 = por %p106, %p107
      %p110 = scmp.ne.s32.totalorder %s95, %s109
      %p111 = scmp.eq.s32.totalorder %s36, 0
      %p112 = por %p110, %p111
      %s114 = sadd.s32 %s113, 1
      %p117 = scmp.eq.s32.totalorder %s30, 1
      %p118 = scmp.ne.s32.totalorder %s113, %s115
      %p119 = scmp.eq.s32.totalorder %s30, 0
      %p120 = por %p118, %p119
      %p121 = scmp.ne.s32.totalorder %s113, %s115
      %p122 = scmp.eq.s32.totalorder %s35, 1
      %p123 = por %p121, %p122
      %p124 = scmp.ne.s32.totalorder %s115, %s116
      %p125 = scmp.eq.s32.totalorder %s35, 0
      %p126 = por %p124, %p125
      %p127 = scmp.ne.s32.totalorder %s115, %s116
      %p128 = scmp.eq.s32.totalorder %s36, 1
      %p129 = por %p127, %p128
      %p131 = scmp.ne.s32.totalorder %s116, %s130
      %p132 = scmp.eq.s32.totalorder %s36, 0
      %p133 = por %p131, %p132
      %s134 = ssub.s32 %s37, %s49
      %s135 = ssub.s32 %s38, %s45
      %s136 = sor.u32 %s134, %s135
      %p137 = scmp.eq.s32.totalorder %s136, 0
      %s139 = sadd.s32 %s138, 1
      %s140 = scalar_select %p137, %s138, %s139
      %p143 = pneg %p137
      %p144 = scmp.eq.s32.totalorder %s30, 1
      %p145 = por %p143, %p144
      %p146 = scmp.ne.s32.totalorder %s138, %s141
      %p147 = scmp.eq.s32.totalorder %s30, 0
      %p148 = por %p146, %p147
      %p149 = scmp.ne.s32.totalorder %s138, %s141
      %p150 = scmp.eq.s32.totalorder %s35, 1
      %p151 = por %p149, %p150
      %p152 = scmp.ne.s32.totalorder %s141, %s142
      %p153 = scmp.eq.s32.totalorder %s35, 0
      %p154 = por %p152, %p153
      %p155 = scmp.ne.s32.totalorder %s141, %s142
      %p156 = scmp.eq.s32.totalorder %s36, 1
      %p157 = por %p155, %p156
      %p159 = scmp.ne.s32.totalorder %s142, %s158
      %p160 = scmp.eq.s32.totalorder %s36, 0
      %p161 = por %p159, %p160
      %s162 = ssub.s32 %s37, %s49
      %s163 = ssub.s32 %s38, %s45
      %s164 = sor.u32 %s162, %s163
      %p165 = scmp.eq.s32.totalorder %s164, 0
      %s167 = sadd.s32 %s166, 1
      %s168 = scalar_select %p165, %s166, %s167
      %p171 = pneg %p165
      %p172 = scmp.eq.s32.totalorder %s30, 1
      %p173 = por %p171, %p172
      %p174 = scmp.ne.s32.totalorder %s166, %s169
      %p175 = scmp.eq.s32.totalorder %s30, 0
      %p176 = por %p174, %p175
      %p177 = scmp.ne.s32.totalorder %s166, %s169
      %p178 = scmp.eq.s32.totalorder %s35, 1
      %p179 = por %p177, %p178
      %p180 = scmp.ne.s32.totalorder %s169, %s170
      %p181 = scmp.eq.s32.totalorder %s35, 0
      %p182 = por %p180, %p181
      %p183 = scmp.ne.s32.totalorder %s169, %s170
      %p184 = scmp.eq.s32.totalorder %s36, 1
      %p185 = por %p183, %p184
      %p187 = scmp.ne.s32.totalorder %s170, %s186
      %p188 = scmp.eq.s32.totalorder %s36, 0
      %p189 = por %p187, %p188
      %s190 = ssub.s32 %s37, %s49
      %s191 = ssub.s32 %s38, %s45
      %s192 = sor.u32 %s190, %s191
      %p193 = scmp.eq.s32.totalorder %s192, 0
      %s195 = sadd.s32 %s194, 1
      %s196 = scalar_select %p193, %s194, %s195
      %p199 = pneg %p193
      %p200 = scmp.eq.s32.totalorder %s30, 1
      %p201 = por %p199, %p200
      %p202 = scmp.ne.s32.totalorder %s194, %s197
      %p203 = scmp.eq.s32.totalorder %s30, 0
      %p204 = por %p202, %p203
      %p205 = scmp.ne.s32.totalorder %s194, %s197
      %p206 = scmp.eq.s32.totalorder %s35, 1
      %p207 = por %p205, %p206
      %p208 = scmp.ne.s32.totalorder %s197, %s198
      %p209 = scmp.eq.s32.totalorder %s35, 0
      %p210 = por %p208, %p209
      %p211 = scmp.ne.s32.totalorder %s197, %s198
      %p212 = scmp.eq.s32.totalorder %s36, 1
      %p213 = por %p211, %p212
      %p215 = scmp.ne.s32.totalorder %s198, %s214
      %p216 = scmp.eq.s32.totalorder %s36, 0
      %p217 = por %p215, %p216
      %s218 = ssub.s32 %s37, %s49
      %s219 = ssub.s32 %s38, %s45
      %s220 = sor.u32 %s218, %s219
      %p221 = scmp.eq.s32.totalorder %s220, 0
      %s223 = sadd.s32 %s222, 1
      %s224 = scalar_select %p221, %s222, %s223
      %p227 = pneg %p221
      %p228 = scmp.eq.s32.totalorder %s30, 1
      %p229 = por %p227, %p228
      %p230 = scmp.ne.s32.totalorder %s222, %s225
      %p231 = scmp.eq.s32.totalorder %s30, 0
      %p232 = por %p230, %p231
      %p233 = scmp.ne.s32.totalorder %s222, %s225
      %p234 = scmp.eq.s32.totalorder %s35, 1
      %p235 = por %p233, %p234
      %p236 = scmp.ne.s32.totalorder %s225, %s226
      %p237 = scmp.eq.s32.totalorder %s35, 0
      %p238 = por %p236, %p237
      %p239 = scmp.ne.s32.totalorder %s225, %s226
      %p240 = scmp.eq.s32.totalorder %s36, 1
      %p241 = por %p239, %p240
      %p243 = scmp.ne.s32.totalorder %s226, %s242
      %p244 = scmp.eq.s32.totalorder %s36, 0
      %p245 = por %p243, %p244
      %s246 = ssub.s32 %s37, %s49
      %p247 = scmp.eq.s32.totalorder %s246, 0
      %s249 = sadd.s32 %s248, 1
      %s250 = scalar_select %p247, %s248, %s249
      %p253 = pneg %p247
      %p254 = scmp.eq.s32.totalorder %s30, 1
      %p255 = por %p253, %p254
      %p256 = scmp.ne.s32.totalorder %s248, %s251
      %p257 = scmp.eq.s32.totalorder %s30, 0
      %p258 = por %p256, %p257
      %p259 = scmp.ne.s32.totalorder %s248, %s251
      %p260 = scmp.eq.s32.totalorder %s35, 1
      %p261 = por %p259, %p260
      %p262 = scmp.ne.s32.totalorder %s251, %s252
      %p263 = scmp.eq.s32.totalorder %s35, 0
      %p264 = por %p262, %p263
      %p265 = scmp.ne.s32.totalorder %s251, %s252
      %p266 = scmp.eq.s32.totalorder %s36, 1
      %p267 = por %p265, %p266
      %p269 = scmp.ne.s32.totalorder %s252, %s268
      %p270 = scmp.eq.s32.totalorder %s36, 0
      %p271 = por %p269, %p270
      %p272 = scmp.le.s32.totalorder 1, %s30
      %p273 = scmp.lt.s32.totalorder %s30, 3
      %p274 = pnand %p272, %p273
      %p275 = pneg %p274
      // Predicated region
      $region9: #{tpu_custom_call.1} parent=5 // pred_check
        _
      $region10: #{tpu_custom_call.1} parent=5 // pred_check_branch
        %277 = sbr.rel (%p274) target = $region12
      $region11: #{tpu_custom_call.1} parent=5 // pred_region
        %s278 = ssub.s32 %s30, 1
        // Predicated region
        $region13: #{tpu_custom_call.1} parent=11 // pred_check
          %p279 = pneg %p63
        $region14: #{tpu_custom_call.1} parent=11 // pred_check_branch
          %281 = sbr.rel (%p279) target = $region16
        $region15: #{tpu_custom_call.1} parent=11 // pred_region
          %s283 = ssub.s32 64, 64
          %284 = vsyncadd [#allocation5], %s283
          %287 = dma.hbm_to_smem %s0, 64, [#allocation2], [#allocation5]
        $region16: #{tpu_custom_call.1} parent=11 // pred_fallthru
          _
        // Predicated region
        $region17: #{tpu_custom_call.1} parent=11 // pred_check
          %p288 = pneg %p84
        $region18: #{tpu_custom_call.1} parent=11 // pred_check_branch
          %290 = sbr.rel (%p288) target = $region20
        $region19: #{tpu_custom_call.1} parent=11 // pred_region
          %s292 = ssub.s32 16, 16
          %293 = vsyncadd [#allocation6], %s292
          %s295 = sshll.u32 %s1, 4
          %s296 = int_to_ptr.vmem [resolvable:$true] %s295
          %298 = dma.vmem_to_smem %s296, 16, [#allocation7], [#allocation6]
        $region20: #{tpu_custom_call.1} parent=11 // pred_fallthru
          _
        // Predicated region
        $region21: #{tpu_custom_call.1} parent=11 // pred_check
          %p299 = pneg %p105
        $region22: #{tpu_custom_call.1} parent=11 // pred_check_branch
          %301 = sbr.rel (%p299) target = $region24
        $region23: #{tpu_custom_call.1} parent=11 // pred_region
          %s303 = ssub.s32 64, 64
          %304 = vsyncadd [#allocation9], %s303
          %307 = dma.hbm_to_smem %s2, 64, [#allocation8], [#allocation9]
        $region24: #{tpu_custom_call.1} parent=11 // pred_fallthru
          _
        // Predicated region
        $region25: #{tpu_custom_call.1} parent=11 // pred_check
          %p308 = pneg %p126
        $region26: #{tpu_custom_call.1} parent=11 // pred_check_branch
          %310 = sbr.rel (%p308) target = $region28
        $region27: #{tpu_custom_call.1} parent=11 // pred_region
          %s312 = ssub.s32 16, 16
          %313 = vsyncadd [#allocation11], %s312
          %s315 = sshll.u32 %s3, 4
          %s316 = int_to_ptr.vmem [resolvable:$true] %s315
          %318 = dma.vmem_to_smem %s316, 16, [#allocation10], [#allocation11]
        $region28: #{tpu_custom_call.1} parent=11 // pred_fallthru
          _
      $region12: #{tpu_custom_call.1} parent=5 // pred_fallthru
        _
      %p319 = scmp.lt.s32.totalorder %s30, 2
      // Predicated region
      $region29: #{tpu_custom_call.1} parent=5 // pred_check
        %p320 = pneg %p319
      $region30: #{tpu_custom_call.1} parent=5 // pred_check_branch
        %322 = sbr.rel (%p320) target = $region32
      $region31: #{tpu_custom_call.1} parent=5 // pred_region
        // Predicated region
        $region33: #{tpu_custom_call.1} parent=31 // pred_check
          %p323 = pneg %p148
        $region34: #{tpu_custom_call.1} parent=31 // pred_check_branch
          %325 = sbr.rel (%p323) target = $region36
        $region35: #{tpu_custom_call.1} parent=31 // pred_region
          %s326 = sand.u32 %s138, 1
          %s327 = scalar_lea.sflag [#allocation3], %s326
          %s328 = sand.u32 %s138, 1
          %s329 = smul.addr %s328, 32
          %s330 = scalar_lea.vmem [#allocation12], %s329
          %s332 = ssub.s32 512, 512
          %333 = vsyncadd %s327, %s332
          %s334 = smul.addr %s37, 4
          %s335 = sadd.s32 %s38, %s334
          %s336 = smul.addr %s335, 128
          %s337 = scalar_lea.hbm %s4, %s336
          %s338 = sshll.u32 %s330, 4
          %s339 = int_to_ptr.vmem [resolvable:$true] %s338
          %344 = dma.hbm_to_vmem [thread:$0]  %s337, 512, %s339, %s327, 128, 128, 8
        $region36: #{tpu_custom_call.1} parent=31 // pred_fallthru
          _
        // Predicated region
        $region37: #{tpu_custom_call.1} parent=31 // pred_check
          %p345 = pneg %p176
        $region38: #{tpu_custom_call.1} parent=31 // pred_check_branch
          %347 = sbr.rel (%p345) target = $region40
        $region39: #{tpu_custom_call.1} parent=31 // pred_region
          %s348 = sand.u32 %s30, 1
          %s349 = scalar_lea.sflag [#allocation14], %s348
          %s350 = sand.u32 %s166, 1
          %s351 = smul.addr %s350, 8
          %s352 = scalar_lea.vmem [#allocation13], %s351
          %s354 = ssub.s32 128, 128
          %355 = vsyncadd %s349, %s354
          %s356 = sadd.s32 %s38, %s37
          %s357 = smul.addr %s356, 128
          %s358 = scalar_lea.hbm %s5, %s357
          %s360 = sshll.u32 %s352, 4
          %s361 = int_to_ptr.vmem [resolvable:$true] %s360
          %363 = dma.hbm_to_vmem [thread:$0]  %s358, 128, %s361, %s349
        $region40: #{tpu_custom_call.1} parent=31 // pred_fallthru
          _
        // Predicated region
        $region41: #{tpu_custom_call.1} parent=31 // pred_check
          %p364 = pneg %p204
        $region42: #{tpu_custom_call.1} parent=31 // pred_check_branch
          %366 = sbr.rel (%p364) target = $region44
        $region43: #{tpu_custom_call.1} parent=31 // pred_region
          %s367 = sand.u32 %s30, 1
          %s368 = scalar_lea.sflag [#allocation14], %s367
          %s369 = sand.u32 %s194, 1
          %s370 = smul.addr %s369, 32
          %s371 = scalar_lea.vmem [#allocation15], %s370
          %s373 = ssub.s32 512, 512
          %374 = vsyncadd %s368, %s373
          %s375 = smul.addr %s37, 4
          %s376 = sadd.s32 %s38, %s375
          %s377 = smul.addr %s376, 128
          %s378 = scalar_lea.hbm %s6, %s377
          %s379 = sshll.u32 %s371, 4
          %s380 = int_to_ptr.vmem [resolvable:$true] %s379
          %385 = dma.hbm_to_vmem [thread:$0]  %s378, 512, %s380, %s368, 128, 128, 8
        $region44: #{tpu_custom_call.1} parent=31 // pred_fallthru
          _
        // Predicated region
        $region45: #{tpu_custom_call.1} parent=31 // pred_check
          %p386 = pneg %p232
        $region46: #{tpu_custom_call.1} parent=31 // pred_check_branch
          %388 = sbr.rel (%p386) target = $region48
        $region47: #{tpu_custom_call.1} parent=31 // pred_region
          %s389 = sand.u32 %s222, 1
          %s390 = scalar_lea.sflag [#allocation17], %s389
          %s391 = sand.u32 %s222, 1
          %s392 = smul.addr %s391, 8
          %s393 = scalar_lea.vmem [#allocation16], %s392
          %s395 = ssub.s32 128, 128
          %396 = vsyncadd %s390, %s395
          %s397 = sadd.s32 %s38, %s37
          %s398 = smul.addr %s397, 128
          %s399 = scalar_lea.hbm %s7, %s398
          %s401 = sshll.u32 %s393, 4
          %s402 = int_to_ptr.vmem [resolvable:$true] %s401
          %404 = dma.hbm_to_vmem [thread:$0]  %s399, 128, %s402, %s390
        $region48: #{tpu_custom_call.1} parent=31 // pred_fallthru
          _
      $region32: #{tpu_custom_call.1} parent=5 // pred_fallthru
        _
      %p405 = scmp.le.s32.totalorder 1, %s30
      %p406 = scmp.lt.s32.totalorder %s30, 3
      %p407 = pnand %p405, %p406
      %p408 = pneg %p407
      // Predicated region
      $region49: #{tpu_custom_call.1} parent=5 // pred_check
        _
      $region50: #{tpu_custom_call.1} parent=5 // pred_check_branch
        %410 = sbr.rel (%p407) target = $region52
      $region51: #{tpu_custom_call.1} parent=5 // pred_region
        %s411 = ssub.s32 %s30, 1
        // Predicated region
        $region53: #{tpu_custom_call.1} parent=51 // pred_check
          %p412 = pneg %p63
        $region54: #{tpu_custom_call.1} parent=51 // pred_check_branch
          %414 = sbr.rel (%p412) target = $region56
        $region55: #{tpu_custom_call.1} parent=51 // pred_region
          %415 = dma.done [#allocation5], 64
        $region56: #{tpu_custom_call.1} parent=51 // pred_fallthru
          _
        // Predicated region
        $region57: #{tpu_custom_call.1} parent=51 // pred_check
          %p416 = pneg %p84
        $region58: #{tpu_custom_call.1} parent=51 // pred_check_branch
          %418 = sbr.rel (%p416) target = $region60
        $region59: #{tpu_custom_call.1} parent=51 // pred_region
          %419 = dma.done [#allocation6], 16
        $region60: #{tpu_custom_call.1} parent=51 // pred_fallthru
          _
        // Predicated region
        $region61: #{tpu_custom_call.1} parent=51 // pred_check
          %p420 = pneg %p105
        $region62: #{tpu_custom_call.1} parent=51 // pred_check_branch
          %422 = sbr.rel (%p420) target = $region64
        $region63: #{tpu_custom_call.1} parent=51 // pred_region
          %423 = dma.done [#allocation9], 64
        $region64: #{tpu_custom_call.1} parent=51 // pred_fallthru
          _
        // Predicated region
        $region65: #{tpu_custom_call.1} parent=51 // pred_check
          %p424 = pneg %p126
        $region66: #{tpu_custom_call.1} parent=51 // pred_check_branch
          %426 = sbr.rel (%p424) target = $region68
        $region67: #{tpu_custom_call.1} parent=51 // pred_region
          %427 = dma.done [#allocation11], 16
        $region68: #{tpu_custom_call.1} parent=51 // pred_fallthru
          _
        %s428 = sand.u32 %s141, 1
        %s429 = scalar_lea.sflag [#allocation3], %s428
        %s430 = sand.u32 %s141, 1
        %s431 = smul.addr %s430, 32
        %s432 = scalar_lea.vmem [#allocation12], %s431
        // Predicated region
        $region69: #{tpu_custom_call.1} parent=51 // pred_check
          %p433 = pneg %p154
        $region70: #{tpu_custom_call.1} parent=51 // pred_check_branch
          %435 = sbr.rel (%p433) target = $region72
        $region71: #{tpu_custom_call.1} parent=51 // pred_region
          %436 = dma.done %s429, 512
        $region72: #{tpu_custom_call.1} parent=51 // pred_fallthru
          _
        %s437 = sand.u32 %s35, 1
        %s438 = scalar_lea.sflag [#allocation14], %s437
        %s439 = sand.u32 %s169, 1
        %s440 = smul.addr %s439, 8
        %s441 = scalar_lea.vmem [#allocation13], %s440
        // Predicated region
        $region73: #{tpu_custom_call.1} parent=51 // pred_check
          %p442 = pneg %p182
        $region74: #{tpu_custom_call.1} parent=51 // pred_check_branch
          %444 = sbr.rel (%p442) target = $region76
        $region75: #{tpu_custom_call.1} parent=51 // pred_region
          %445 = dma.done %s438, 128
        $region76: #{tpu_custom_call.1} parent=51 // pred_fallthru
          _
        %s446 = sand.u32 %s35, 1
        %s447 = scalar_lea.sflag [#allocation14], %s446
        %s448 = sand.u32 %s197, 1
        %s449 = smul.addr %s448, 32
        %s450 = scalar_lea.vmem [#allocation15], %s449
        // Predicated region
        $region77: #{tpu_custom_call.1} parent=51 // pred_check
          %p451 = pneg %p210
        $region78: #{tpu_custom_call.1} parent=51 // pred_check_branch
          %453 = sbr.rel (%p451) target = $region80
        $region79: #{tpu_custom_call.1} parent=51 // pred_region
          %454 = dma.done %s447, 512
        $region80: #{tpu_custom_call.1} parent=51 // pred_fallthru
          _
        %s455 = sand.u32 %s225, 1
        %s456 = scalar_lea.sflag [#allocation17], %s455
        %s457 = sand.u32 %s225, 1
        %s458 = smul.addr %s457, 8
        %s459 = scalar_lea.vmem [#allocation16], %s458
        // Predicated region
        $region81: #{tpu_custom_call.1} parent=51 // pred_check
          %p460 = pneg %p238
        $region82: #{tpu_custom_call.1} parent=51 // pred_check_branch
          %462 = sbr.rel (%p460) target = $region84
        $region83: #{tpu_custom_call.1} parent=51 // pred_region
          %463 = dma.done %s456, 128
        $region84: #{tpu_custom_call.1} parent=51 // pred_fallthru
          _
        %464 = sfence
        %p465 = pneg %p63
        %p466 = pneg %p60
        %p467 = pneg %p84
        %p468 = pneg %p81
        %p469 = pneg %p105
        %p470 = pneg %p102
        %p471 = pneg %p126
        %p472 = pneg %p123
        %s473 = sand.u32 %s141, 1
        %s474 = scalar_lea.sflag [#allocation3], %s473
        %s475 = sand.u32 %s141, 1
        %s476 = smul.addr %s475, 32
        %s477 = scalar_lea.vmem [#allocation12], %s476
        %p478 = pneg %p154
        %p479 = pneg %p151
        %s480 = sand.u32 %s35, 1
        %s481 = scalar_lea.sflag [#allocation14], %s480
        %s482 = sand.u32 %s169, 1
        %s483 = smul.addr %s482, 8
        %s484 = scalar_lea.vmem [#allocation13], %s483
        %p485 = pneg %p182
        %p486 = pneg %p179
        %s487 = sand.u32 %s35, 1
        %s488 = scalar_lea.sflag [#allocation14], %s487
        %s489 = sand.u32 %s197, 1
        %s490 = smul.addr %s489, 32
        %s491 = scalar_lea.vmem [#allocation15], %s490
        %p492 = pneg %p210
        %p493 = pneg %p207
        %s494 = sand.u32 %s225, 1
        %s495 = scalar_lea.sflag [#allocation17], %s494
        %s496 = sand.u32 %s225, 1
        %s497 = smul.addr %s496, 8
        %s498 = scalar_lea.vmem [#allocation16], %s497
        %p499 = pneg %p238
        %p500 = pneg %p235
        %p501 = pneg %p264
        %p502 = pneg %p261
        %s503 = sand.u32 %s251, 1
        %s504 = scalar_lea.sflag [#allocation4], %s503
        %s505 = sand.u32 %s251, 1
        %s506 = smul.addr %s505, 32
        %s507 = scalar_lea.vmem [#allocation18], %s506
        %s508 = sld [smem:[#allocation2]]
        %s509 = sld [smem:[#allocation2 + $0x1]]
        %s510 = sld [smem:[#allocation2 + $0x2]]
        %s511 = sld [smem:[#allocation2 + $0x3]]
        %s512 = sld [smem:[#allocation2 + $0x80]]
        %s513 = sld [smem:[#allocation2 + $0x81]]
        %s514 = sld [smem:[#allocation2 + $0x82]]
        %s515 = sld [smem:[#allocation2 + $0x83]]
        %s516 = sld [smem:[#allocation2 + $0x100]]
        %s517 = sld [smem:[#allocation2 + $0x101]]
        %s518 = sld [smem:[#allocation2 + $0x102]]
        %s519 = sld [smem:[#allocation2 + $0x103]]
        %s520 = sld [smem:[#allocation2 + $0x180]]
        %s521 = sld [smem:[#allocation2 + $0x181]]
        %s522 = sld [smem:[#allocation2 + $0x182]]
        %s523 = sld [smem:[#allocation2 + $0x183]]
        %s524 = sld [smem:[#allocation8]]
        %s525 = sld [smem:[#allocation8 + $0x1]]
        %s526 = sld [smem:[#allocation8 + $0x2]]
        %s527 = sld [smem:[#allocation8 + $0x3]]
        %s528 = sld [smem:[#allocation8 + $0x80]]
        %s529 = sld [smem:[#allocation8 + $0x81]]
        %s530 = sld [smem:[#allocation8 + $0x82]]
        %s531 = sld [smem:[#allocation8 + $0x83]]
        %s532 = sld [smem:[#allocation8 + $0x100]]
        %s533 = sld [smem:[#allocation8 + $0x101]]
        %s534 = sld [smem:[#allocation8 + $0x102]]
        %s535 = sld [smem:[#allocation8 + $0x103]]
        %s536 = sld [smem:[#allocation8 + $0x180]]
        %s537 = sld [smem:[#allocation8 + $0x181]]
        %s538 = sld [smem:[#allocation8 + $0x182]]
        %s539 = sld [smem:[#allocation8 + $0x183]]
        %s540 = sld [smem:[#allocation7]]
        %s541 = sld [smem:[#allocation7 + $0x1]]
        %s542 = sld [smem:[#allocation7 + $0x2]]
        %s543 = sld [smem:[#allocation7 + $0x3]]
        %s544 = sld [smem:[#allocation10]]
        %s545 = sld [smem:[#allocation10 + $0x1]]
        %s546 = sld [smem:[#allocation10 + $0x2]]
        %s547 = sld [smem:[#allocation10 + $0x3]]
        %v548 = vld [vmem:[%s432] sm:$0xff]
        %s549 = sadd.s32 0, 8
        %s550 = scalar_lea.vmem %s432, %s549 [#allocation12]
        %v551 = vld [vmem:[%s550] sm:$0xff]
        %s552 = sadd.s32 0, 16
        %s553 = scalar_lea.vmem %s432, %s552 [#allocation12]
        %v554 = vld [vmem:[%s553] sm:$0xff]
        %s555 = sadd.s32 0, 24
        %s556 = scalar_lea.vmem %s432, %s555 [#allocation12]
        %v557 = vld [vmem:[%s556] sm:$0xff]
        %v558 = vld [vmem:[%s450] sm:$0xff]
        %s559 = scalar_lea.vmem %s450, %s549 [#allocation15]
        %v560 = vld [vmem:[%s559] sm:$0xff]
        %s561 = scalar_lea.vmem %s450, %s552 [#allocation15]
        %v562 = vld [vmem:[%s561] sm:$0xff]
        %s563 = scalar_lea.vmem %s450, %s555 [#allocation15]
        %v564 = vld [vmem:[%s563] sm:$0xff]
        %v565 = vld [vmem:[%s441] sm:$0xff]
        %v566 = vld [vmem:[%s459] sm:$0xff]
        %v567 = vstv %s508
        %v568 = vmul.f32 %v567, %v548
        %v569 = vstv %s540
        %v570 = vadd.f32 %v568, %v569
        %v571 = vstv %s524
        %v572 = vmul.f32 %v571, %v548
        %v573 = vstv %s544
        %v574 = vadd.f32 %v572, %v573
        %v575 = vstv %s509
        %v576 = vmul.f32 %v575, %v551
        %v577 = vadd.f32 %v570, %v576
        %v578 = vstv %s525
        %v579 = vmul.f32 %v578, %v551
        %v580 = vadd.f32 %v574, %v579
        %v581 = vstv %s510
        %v582 = vmul.f32 %v581, %v554
        %v583 = vadd.f32 %v577, %v582
        %v584 = vstv %s526
        %v585 = vmul.f32 %v584, %v554
        %v586 = vadd.f32 %v580, %v585
        %v587 = vstv %s511
        %v588 = vmul.f32 %v587, %v557
        %v589 = vadd.f32 %v583, %v588
        %v590 = vstv %s527
        %v591 = vmul.f32 %v590, %v557
        %v592 = vadd.f32 %v586, %v591
        %v593 = vtanh.pop %v589
        %v594 = vmul.f32 %v593, 0.5
        %v595 = vadd.f32 %v594, 0.5
        %v596 = vtanh.pop %v592
        %v597 = vmul.f32 %v596, 0.5
        %v598 = vadd.f32 %v597, 0.5
        %v599 = vmul.f32 %v595, %v558
        %v600 = vmul.f32 %v598, %v548
        %v601 = vstv %s512
        %v602 = vmul.f32 %v601, %v548
        %v603 = vstv %s541
        %v604 = vadd.f32 %v602, %v603
        %v605 = vstv %s528
        %v606 = vmul.f32 %v605, %v548
        %v607 = vstv %s545
        %v608 = vadd.f32 %v606, %v607
        %v609 = vstv %s513
        %v610 = vmul.f32 %v609, %v551
        %v611 = vadd.f32 %v604, %v610
        %v612 = vstv %s529
        %v613 = vmul.f32 %v612, %v551
        %v614 = vadd.f32 %v608, %v613
        %v615 = vstv %s514
        %v616 = vmul.f32 %v615, %v554
        %v617 = vadd.f32 %v611, %v616
        %v618 = vstv %s530
        %v619 = vmul.f32 %v618, %v554
        %v620 = vadd.f32 %v614, %v619
        %v621 = vstv %s515
        %v622 = vmul.f32 %v621, %v557
        %v623 = vadd.f32 %v617, %v622
        %v624 = vstv %s531
        %v625 = vmul.f32 %v624, %v557
        %v626 = vadd.f32 %v620, %v625
        %v627 = vtanh.pop %v623
        %v628 = vmul.f32 %v627, 0.5
        %v629 = vadd.f32 %v628, 0.5
        %v630 = vtanh.pop %v626
        %v631 = vmul.f32 %v630, 0.5
        %v632 = vadd.f32 %v631, 0.5
        %v633 = vmul.f32 %v629, %v560
        %v634 = vmul.f32 %v632, %v551
        %v635 = vstv %s516
        %v636 = vmul.f32 %v635, %v548
        %v637 = vstv %s542
        %v638 = vadd.f32 %v636, %v637
        %v639 = vstv %s532
        %v640 = vmul.f32 %v639, %v548
        %v641 = vstv %s546
        %v642 = vadd.f32 %v640, %v641
        %v643 = vstv %s517
        %v644 = vmul.f32 %v643, %v551
        %v645 = vadd.f32 %v638, %v644
        %v646 = vstv %s533
        %v647 = vmul.f32 %v646, %v551
        %v648 = vadd.f32 %v642, %v647
        %v649 = vstv %s518
        %v650 = vmul.f32 %v649, %v554
        %v651 = vadd.f32 %v645, %v650
        %v652 = vstv %s534
        %v653 = vmul.f32 %v652, %v554
        %v654 = vadd.f32 %v648, %v653
        %v655 = vstv %s519
        %v656 = vmul.f32 %v655, %v557
        %v657 = vadd.f32 %v651, %v656
        %v658 = vstv %s535
        %v659 = vmul.f32 %v658, %v557
        %v660 = vadd.f32 %v654, %v659
        %v661 = vtanh.pop %v657
        %v662 = vmul.f32 %v661, 0.5
        %v663 = vadd.f32 %v662, 0.5
        %v664 = vtanh.pop %v660
        %v665 = vmul.f32 %v664, 0.5
        %v666 = vadd.f32 %v665, 0.5
        %v667 = vmul.f32 %v663, %v562
        %v668 = vmul.f32 %v666, %v554
        %v669 = vstv %s520
        %v670 = vmul.f32 %v669, %v548
        %v671 = vstv %s543
        %v672 = vadd.f32 %v670, %v671
        %v673 = vstv %s536
        %v674 = vmul.f32 %v673, %v548
        %v675 = vstv %s547
        %v676 = vadd.f32 %v674, %v675
        %v677 = vstv %s521
        %v678 = vmul.f32 %v677, %v551
        %v679 = vadd.f32 %v672, %v678
        %v680 = vstv %s537
        %v681 = vmul.f32 %v680, %v551
        %v682 = vadd.f32 %v676, %v681
        %v683 = vstv %s522
        %v684 = vmul.f32 %v683, %v554
        %v685 = vadd.f32 %v679, %v684
        %v686 = vstv %s538
        %v687 = vmul.f32 %v686, %v554
        %v688 = vadd.f32 %v682, %v687
        %v689 = vstv %s523
        %v690 = vmul.f32 %v689, %v557
        %v691 = vadd.f32 %v685, %v690
        %v692 = vstv %s539
        %v693 = vmul.f32 %v692, %v557
        %v694 = vadd.f32 %v688, %v693
        %v695 = vtanh.pop %v691
        %v696 = vmul.f32 %v695, 0.5
        %v697 = vadd.f32 %v696, 0.5
        %v698 = vtanh.pop %v694
        %v699 = vmul.f32 %v698, 0.5
        %v700 = vadd.f32 %v699, 0.5
        %v701 = vmul.f32 %v697, %v564
        %v702 = vmul.f32 %v700, %v557
        %v703 = vadd.f32 %v599, %v633
        %v704 = vadd.f32 %v600, %v634
        %v705 = vadd.f32 %v703, %v667
        %v706 = vadd.f32 %v704, %v668
        %v707 = vadd.f32 %v705, %v701
        %v708 = vadd.f32 %v706, %v702
        %v709 = vsub.f32 %v707, %v566
        %v710 = vand.u32 2147483647, %v709
        %v711 = vadd.f32 %v710, 0.0
        %v712 = vsub.f32 %v708, %v565
        %v713 = vand.u32 2147483647, %v712
        %v714 = vadd.f32 %v713, 0.0
        %v715 = vsub.f32 %v707, %v599
        %v716 = vsub.f32 %v566, %v715
        %v717 = vadd.f32 %v595, 1e-23
        %v718 = vrcp.pop %v717
        %v719 = vmul.f32 %v716, %v718
        %v720 = vsub.f32 %v708, %v600
        %v721 = vsub.f32 %v565, %v720
        %v722 = vadd.f32 %v598, 1e-23
        %v723 = vrcp.pop %v722
        %v724 = vmul.f32 %v721, %v723
        %v725 = vmax.f32 %v719, 0.0
        %v726 = vmin.f32 %v725, 1.0
        %v727 = vsub.f32 %v726, %v558
        %v728 = vand.u32 2147483647, %v727
        %v729 = vadd.f32 %v728, 0.0
        %v730 = vmax.f32 %v724, 0.0
        %v731 = vmin.f32 %v730, 1.0
        %v732 = vsub.f32 %v731, %v548
        %v733 = vand.u32 2147483647, %v732
        %v734 = vadd.f32 %v733, 0.0
        %v735 = vsub.f32 %v707, %v633
        %v736 = vsub.f32 %v566, %v735
        %v737 = vadd.f32 %v629, 1e-23
        %v738 = vrcp.pop %v737
        %v739 = vmul.f32 %v736, %v738
        %v740 = vsub.f32 %v708, %v634
        %v741 = vsub.f32 %v565, %v740
        %v742 = vadd.f32 %v632, 1e-23
        %v743 = vrcp.pop %v742
        %v744 = vmul.f32 %v741, %v743
        %v745 = vmax.f32 %v739, 0.0
        %v746 = vmin.f32 %v745, 1.0
        %v747 = vsub.f32 %v746, %v560
        %v748 = vand.u32 2147483647, %v747
        %v749 = vadd.f32 %v729, %v748
        %v750 = vmax.f32 %v744, 0.0
        %v751 = vmin.f32 %v750, 1.0
        %v752 = vsub.f32 %v751, %v551
        %v753 = vand.u32 2147483647, %v752
        %v754 = vadd.f32 %v734, %v753
        %v755 = vsub.f32 %v707, %v667
        %v756 = vsub.f32 %v566, %v755
        %v757 = vadd.f32 %v663, 1e-23
        %v758 = vrcp.pop %v757
        %v759 = vmul.f32 %v756, %v758
        %v760 = vsub.f32 %v708, %v668
        %v761 = vsub.f32 %v565, %v760
        %v762 = vadd.f32 %v666, 1e-23
        %v763 = vrcp.pop %v762
        %v764 = vmul.f32 %v761, %v763
        %v765 = vmax.f32 %v759, 0.0
        %v766 = vmin.f32 %v765, 1.0
        %v767 = vsub.f32 %v766, %v562
        %v768 = vand.u32 2147483647, %v767
        %v769 = vadd.f32 %v749, %v768
        %v770 = vmax.f32 %v764, 0.0
        %v771 = vmin.f32 %v770, 1.0
        %v772 = vsub.f32 %v771, %v554
        %v773 = vand.u32 2147483647, %v772
        %v774 = vadd.f32 %v754, %v773
        %v775 = vsub.f32 %v707, %v701
        %v776 = vsub.f32 %v566, %v775
        %v777 = vadd.f32 %v697, 1e-23
        %v778 = vrcp.pop %v777
        %v779 = vmul.f32 %v776, %v778
        %v780 = vsub.f32 %v708, %v702
        %v781 = vsub.f32 %v565, %v780
        %v782 = vadd.f32 %v700, 1e-23
        %v783 = vrcp.pop %v782
        %v784 = vmul.f32 %v781, %v783
        %v785 = vmax.f32 %v779, 0.0
        %v786 = vmin.f32 %v785, 1.0
        %v787 = vsub.f32 %v786, %v564
        %v788 = vand.u32 2147483647, %v787
        %v789 = vadd.f32 %v769, %v788
        %v790 = vmax.f32 %v784, 0.0
        %v791 = vmin.f32 %v790, 1.0
        %v792 = vsub.f32 %v791, %v557
        %v793 = vand.u32 2147483647, %v792
        %v794 = vadd.f32 %v774, %v793
        %p795 = scmp.eq.s32.totalorder %s40, 0
        // Predicated region
        $region85: #{tpu_custom_call.1} parent=51 // pred_check
          %p796 = pneg %p795
        $region86: #{tpu_custom_call.1} parent=51 // pred_check_branch
          %798 = sbr.rel (%p796) target = $region88
        $region87: #{tpu_custom_call.1} parent=51 // pred_region
          %799 = vst [vmem:[%s507] sm:$0xff] 0.0
          %800 = vst [vmem:[%s507 + $0x8] sm:$0xff] 0.0
          %801 = vst [vmem:[%s507 + $0x10] sm:$0xff] 0.0
          %802 = vst [vmem:[%s507 + $0x18] sm:$0xff] 0.0
        $region88: #{tpu_custom_call.1} parent=51 // pred_fallthru
          _
        %v803 = vld [vmem:[%s507] sm:$0xff]
        %v804 = vadd.f32 %v803, %v711
        %805 = vst [vmem:[%s507] sm:$0xff] %v804
        %s806 = scalar_lea.vmem %s507, 8 [#allocation18]
        %v807 = vld [vmem:[%s806] sm:$0xff]
        %v808 = vadd.f32 %v807, %v714
        %809 = vst [vmem:[%s806] sm:$0xff] %v808
        %s810 = scalar_lea.vmem %s507, 16 [#allocation18]
        %v811 = vld [vmem:[%s810] sm:$0xff]
        %v812 = vadd.f32 %v811, %v789
        %813 = vst [vmem:[%s810] sm:$0xff] %v812
        %s814 = scalar_lea.vmem %s507, 24 [#allocation18]
        %v815 = vld [vmem:[%s814] sm:$0xff]
        %v816 = vadd.f32 %v815, %v794
        %817 = vst [vmem:[%s814] sm:$0xff] %v816
        %s818 = sand.u32 %s251, 1
        %s819 = scalar_lea.sflag [#allocation4], %s818
        %s820 = sand.u32 %s251, 1
        %s821 = smul.addr %s820, 32
        %s822 = scalar_lea.vmem [#allocation18], %s821
        // Predicated region
        $region89: #{tpu_custom_call.1} parent=51 // pred_check
          %p823 = pneg %p261
        $region90: #{tpu_custom_call.1} parent=51 // pred_check_branch
          %825 = sbr.rel (%p823) target = $region92
        $region91: #{tpu_custom_call.1} parent=51 // pred_region
          %s827 = ssub.s32 512, 512
          %828 = vsyncadd %s819, %s827
          %s829 = smul.addr %s39, 4
          %s830 = smul.addr %s829, 128
          %s831 = scalar_lea.hbm %s8, %s830
          %s832 = sshll.u32 %s822, 4
          %s833 = int_to_ptr.vmem [resolvable:$true] %s832
          %838 = dma.vmem_to_hbm [thread:$0]  %s833, 512, %s831, %s819, 128, 128, 8
        $region92: #{tpu_custom_call.1} parent=51 // pred_fallthru
          _
      $region52: #{tpu_custom_call.1} parent=5 // pred_fallthru
        _
      %p839 = scmp.le.s32.totalorder 2, %s30
      // Predicated region
      $region93: #{tpu_custom_call.1} parent=5 // pred_check
        %p840 = pneg %p839
      $region94: #{tpu_custom_call.1} parent=5 // pred_check_branch
        %842 = sbr.rel (%p840) target = $region96
      $region95: #{tpu_custom_call.1} parent=5 // pred_region
        %s843 = ssub.s32 %s30, 2
        // Predicated region
        $region97: #{tpu_custom_call.1} parent=95 // pred_check
          %p844 = pneg %p267
        $region98: #{tpu_custom_call.1} parent=95 // pred_check_branch
          %846 = sbr.rel (%p844) target = $region100
        $region99: #{tpu_custom_call.1} parent=95 // pred_region
          %s847 = sand.u32 %s252, 1
          %s848 = scalar_lea.sflag [#allocation4], %s847
          %s849 = sand.u32 %s252, 1
          %s850 = smul.addr %s849, 32
          %s851 = scalar_lea.vmem [#allocation18], %s850
          %852 = dma.done %s848, 512
        $region100: #{tpu_custom_call.1} parent=95 // pred_fallthru
          _
      $region96: #{tpu_custom_call.1} parent=5 // pred_fallthru
        _
    $region6: #{tpu_custom_call.1} parent=1 // loop_footer
      %s34 = sadd.s32 1, %s30
    $region7: #{tpu_custom_call.1} parent=1 // loop_footer_branch
      %29 = sbr.rel target = $region3
    $region8: #{tpu_custom_call.1} parent=1 // loop_exit
      _
    %853 = vsyncpa [#allocation3], 1
    %s854 = scalar_lea.sflag [#allocation3], 1
    %855 = vsyncpa %s854, 1
    %856 = vsyncpa [#allocation14], 1
    %s857 = scalar_lea.sflag [#allocation14], 1
    %858 = vsyncpa %s857, 1
    %859 = vsyncpa [#allocation17], 1
    %s860 = scalar_lea.sflag [#allocation17], 1
    %861 = vsyncpa %s860, 1
    %862 = vsyncpa [#allocation4], 1
    %s863 = scalar_lea.sflag [#allocation4], 1
    %864 = vsyncpa %s863, 1
    %865 = vsyncpa [#allocation5], 1
    %s866 = scalar_lea.sflag [#allocation5], 1
    %867 = vsyncpa %s866, 1
    %868 = vsyncpa [#allocation9], 1
    %869 = vsyncpa [#allocation6], 1
    %s870 = scalar_lea.sflag [#allocation6], 1
    %871 = vsyncpa %s870, 1
    %872 = vsyncpa [#allocation11], 1

</llo_original>
